<compile_context>
chip_gen: v6e
topology: v6e:2x2x1
jax: 0.10.0
libtpu: 0.0.40
codegen_flags: <defaults>
</compile_context>

<pallas_src>
import functools
from typing import NamedTuple

import jax
import jax.numpy as jnp
from jax import lax
from jax.experimental import pallas as pl
from jax.experimental.pallas import tpu as pltpu

EPS = 1e-9

SLAB_ROWS = 19   # rp(3) tv(3) xd(3) omega(3) cog(3) gdd(3) valid(1)
OUT_ROWS = 16    # F_spring(3) F_friction(3) in_contact(1) pad(1) torque(3) xdd(3) pad(2)


# ----------------------------- configs / containers -----------------------------

class PhysicsEngineConfig(NamedTuple):
    num_robots: int
    gravity: float = 9.8
    dt: float = 0.01
    damping_alpha: float = 1.0
    contact_temperature: float = 0.05
    torque_limit: float = 200.0


class RobotModelConfig(NamedTuple):
    num_driving_parts: int
    points_per_driving_part: int
    joint_positions: jnp.ndarray                # (Nd, 3)
    joint_local_driving_part_pts: jnp.ndarray   # (Nd, Pd, 3)
    joint_local_driving_part_cogs: jnp.ndarray  # (Nd, 3)
    driving_part_inertias: jnp.ndarray          # (Nd, 3, 3)
    driving_part_masses: jnp.ndarray            # (Nd,)
    body_mass: float
    body_cog: jnp.ndarray                       # (3,)
    body_inertia: jnp.ndarray                   # (3, 3)
    body_points: jnp.ndarray                    # (Nb, 3)
    thrust_directions: jnp.ndarray              # (Nd, Pd, 3)
    driving_direction: jnp.ndarray              # (3,)
    v_max: float
    joint_max_pivot_vels: float
    joint_limits: tuple
    total_mass: float


class TerrainConfig(NamedTuple):
    z_grid: jnp.ndarray        # (B, H, W)
    z_grid_grad: jnp.ndarray   # (B, 2, H, W)  -> [dz/dx, dz/dy]
    max_coord: float
    k_stiffness: float
    k_friction_lon: float
    k_friction_lat: float


class PhysicsState(NamedTuple):
    x: jnp.ndarray       # (B, 3)
    xd: jnp.ndarray      # (B, 3)
    q: jnp.ndarray       # (B, 4) (w, x, y, z)
    omega: jnp.ndarray   # (B, 3)
    thetas: jnp.ndarray  # (B, Nd)


# ----------------------------- small math helpers (glue) -----------------------------

def rot_Y(theta):
    # theta: (M, 1) -> (M, 3, 3)
    c = jnp.cos(theta)
    s = jnp.sin(theta)
    z = jnp.zeros_like(c)
    o = jnp.ones_like(c)
    r0 = jnp.concatenate([c, z, s], axis=-1)
    r1 = jnp.concatenate([z, o, z], axis=-1)
    r2 = jnp.concatenate([-s, z, c], axis=-1)
    return jnp.stack([r0, r1, r2], axis=-2)


def q_to_R(q):
    # q: (B, 4) wxyz -> (B, 3, 3)
    w, x, y, z = q[:, 0], q[:, 1], q[:, 2], q[:, 3]
    r0 = jnp.stack([1 - 2 * (y * y + z * z), 2 * (x * y - z * w), 2 * (x * z + y * w)], -1)
    r1 = jnp.stack([2 * (x * y + z * w), 1 - 2 * (x * x + z * z), 2 * (y * z - x * w)], -1)
    r2 = jnp.stack([2 * (x * z - y * w), 2 * (y * z + x * w), 1 - 2 * (x * x + y * y)], -1)
    return jnp.stack([r0, r1, r2], axis=-2)


def quat_mul(q1, q2):
    w1, x1, y1, z1 = jnp.split(q1, 4, axis=-1)
    w2, x2, y2, z2 = jnp.split(q2, 4, axis=-1)
    return jnp.concatenate([
        w1 * w2 - x1 * x2 - y1 * y2 - z1 * z2,
        w1 * x2 + x1 * w2 + y1 * z2 - z1 * y2,
        w1 * y2 - x1 * z2 + y1 * w2 + z1 * x2,
        w1 * z2 + x1 * y2 - y1 * x2 + z1 * w2,
    ], axis=-1)


def integrate_quaternion(q, omega, dt):
    omega_q = jnp.concatenate([jnp.zeros_like(omega[:, :1]), omega], axis=-1)
    dq = 0.5 * quat_mul(q, omega_q)
    q_next = q + dq * dt
    return q_next / jnp.maximum(jnp.linalg.norm(q_next, axis=-1, keepdims=True), EPS)


def solve3x3(A, b):
    """Closed-form adjugate solve of A x = b for batched 3x3 (avoids LU custom call)."""
    a00, a01, a02 = A[:, 0, 0], A[:, 0, 1], A[:, 0, 2]
    a10, a11, a12 = A[:, 1, 0], A[:, 1, 1], A[:, 1, 2]
    a20, a21, a22 = A[:, 2, 0], A[:, 2, 1], A[:, 2, 2]
    c00 = a11 * a22 - a12 * a21
    c01 = a12 * a20 - a10 * a22
    c02 = a10 * a21 - a11 * a20
    c10 = a02 * a21 - a01 * a22
    c11 = a00 * a22 - a02 * a20
    c12 = a01 * a20 - a00 * a21
    c20 = a01 * a12 - a02 * a11
    c21 = a02 * a10 - a00 * a12
    c22 = a00 * a11 - a01 * a10
    det = a00 * c00 + a01 * c01 + a02 * c02
    inv_det = 1.0 / jnp.where(jnp.abs(det) < EPS, EPS, det)
    b0, b1, b2 = b[:, 0], b[:, 1], b[:, 2]
    x0 = (c00 * b0 + c10 * b1 + c20 * b2) * inv_det
    x1 = (c01 * b0 + c11 * b1 + c21 * b2) * inv_det
    x2 = (c02 * b0 + c12 * b1 + c22 * b2) * inv_det
    return jnp.stack([x0, x1, x2], axis=-1)


# ----------------------------- Pallas kernel (hot path) -----------------------------

def _make_physics_kernel(*, N, Npp, H, W, gravity, damping_alpha,
                         contact_temperature, torque_limit, total_mass):
    HW = H * W
    L = Npp
    inv_T = 1.0 / float(contact_temperature)
    inv_m = 1.0 / float(total_mass)
    g = float(gravity)
    da2 = 2.0 * float(damping_alpha)
    tlim = float(torque_limit)
    tm = float(total_mass)

    def _cross(a, b):
        # a, b: (3, L) row-stacked vectors -> cross product along the 3-row axis
        ax, ay, az = a[0:1, :], a[1:2, :], a[2:3, :]
        bx, by, bz = b[0:1, :], b[1:2, :], b[2:3, :]
        return jnp.concatenate([ay * bz - az * by,
                                az * bx - ax * bz,
                                ax * by - ay * bx], axis=0)

    def _rowdot(a, b):
        # explicit unrolled 3-row dot product -> (1, L), no cross-sublane reduce
        return (a[0:1, :] * b[0:1, :] + a[1:2, :] * b[1:2, :] + a[2:3, :] * b[2:3, :])

    def kernel(params_ref, slab_ref, table_ref, out_ref):
        # runtime terrain scalars from SMEM (scalar prefetch)
        ks = params_ref[0]
        kf_lon = params_ref[1]
        kf_lat = params_ref[2]
        max_coord = params_ref[3]
        sx = params_ref[4]          # (W-1) / (2*max_coord), precomputed in glue
        sy = params_ref[5]          # (H-1) / (2*max_coord)

        slab = slab_ref[0]                         # (SLAB_ROWS, L)
        rp = slab[0:3, :]                          # robot points (world)
        tv = slab[3:6, :]                          # thrust vectors (world)
        xd = slab[6:9, :]                          # per-robot xd (broadcast per point)
        omega = slab[9:12, :]
        cog = slab[12:15, :]
        gdd = slab[15:18, :]                       # global driving direction
        valid = slab[18:19, :]                     # 1.0 for real points, 0.0 for pad

        # ---- terrain bilinear interp: single one-hot + pre-shifted 12-row table ----
        gx = jnp.clip((rp[0:1, :] + max_coord) * sx, 0.0, W - 1.0)
        gy = jnp.clip((rp[1:2, :] + max_coord) * sy, 0.0, H - 1.0)
        x0 = jnp.clip(jnp.floor(gx).astype(jnp.int32), 0, W - 2)
        y0 = jnp.clip(jnp.floor(gy).astype(jnp.int32), 0, H - 2)
        wx = gx - x0.astype(jnp.float32)
        wy = gy - y0.astype(jnp.float32)
        idx00 = y0 * W + x0                                                 # (1, L)
        col = lax.broadcasted_iota(jnp.int32, (HW, L), 0)
        gmat = jnp.where(col == idx00, 1.0, 0.0)                            # (HW, L) 0/1
        interp12 = jnp.dot(table_ref[0], gmat,
                           preferred_element_type=jnp.float32)              # (12, L)
        w00 = (1.0 - wx) * (1.0 - wy)
        w10 = wx * (1.0 - wy)
        w01 = (1.0 - wx) * wy
        w11 = wx * wy
        interp = (w00 * interp12[0:3, :] + w10 * interp12[3:6, :]
                  + w01 * interp12[6:9, :] + w11 * interp12[9:12, :])       # (3, L)
        z_pts = interp[0:1, :]
        gdx = interp[1:2, :]
        gdy = interp[2:3, :]
        inv_nrm = lax.rsqrt(gdx * gdx + gdy * gdy + 1.0)
        n = jnp.concatenate([-gdx, -gdy, jnp.ones_like(gdx)], axis=0) * inv_nrm
        nz = n[2:3, :]

        # ---- contact model (stable sigmoid(-dh/T) via EUP reciprocal) ----
        # NOTE: like the PyTorch reference, in_contact multiplies dh once here and the
        # full spring force again below (stiffness ~ sigmoid^2, damping ~ sigmoid^1).
        dh = (rp[2:3, :] - z_pts) * nz
        a = dh * inv_T
        e = jnp.exp(-jnp.abs(a))
        r = pl.reciprocal(1.0 + e, approx=True)
        sig = jnp.where(a >= 0.0, e * r, r)
        in_contact = sig * valid                   # padded lanes masked out
        dh_c = dh * in_contact

        # ---- point kinematics ----
        ccp = rp - cog
        xd_pts = xd + _cross(omega, ccp)

        # ---- per-robot contact count (this grid step owns exactly one robot) ----
        nc = jnp.maximum(jnp.sum(in_contact, axis=1, keepdims=True), 1.0)   # (1, 1)
        inv_nc = pl.reciprocal(nc, approx=True)

        # ---- spring force ----
        xd_n = _rowdot(xd_pts, n)
        kd = da2 * jnp.sqrt(tm * ks * inv_nc)                               # (1, 1)
        scale = -(ks * dh_c + kd * xd_n) * in_contact * inv_nc              # (1, L)
        F_spring = scale * n
        Nmag = jnp.abs(scale)                      # |F_spring| since n is unit length

        # ---- friction ----
        gdd_t = gdd - _rowdot(gdd, n) * n
        fwd = gdd_t * lax.rsqrt(jnp.maximum(_rowdot(gdd_t, gdd_t), EPS * EPS))
        lat = _cross(fwd, n)
        lat = lat * lax.rsqrt(jnp.maximum(_rowdot(lat, lat), EPS * EPS))
        dv = tv - xd_pts
        dv_n = _rowdot(dv, n)
        dv_tau = jnp.tanh(dv - dv_n * n)
        dv_lon = _rowdot(dv_tau, fwd) * fwd
        dv_lat = _rowdot(dv_tau, lat) * lat
        F_friction = (kf_lon * dv_lon + kf_lat * dv_lat) * Nmag

        # ---- torque + summed force: ONE fused MXU reduction (broadcast across lanes) ----
        act = F_spring + F_friction                # exactly 0 on padded lanes
        stacked = jnp.concatenate([_cross(ccp, act), act], axis=0)          # (6, L)
        ones_LL = jnp.ones((L, L), jnp.float32)
        sums = jnp.dot(stacked, ones_LL, preferred_element_type=jnp.float32)  # (6, L)
        tq = jnp.clip(sums[0:3, :], -tlim, tlim)
        F_sum = sums[3:6, :]
        xdd = F_sum * inv_m
        xdd = jnp.concatenate([xdd[0:2, :], xdd[2:3, :] - g], axis=0)

        # ---- one lane-dense packed writeback ----
        packed = jnp.concatenate(
            [F_spring, F_friction, in_contact, jnp.zeros((1, L), jnp.float32),
             tq, xdd, jnp.zeros((2, L), jnp.float32)], axis=0)              # (16, L)
        out_ref[...] = packed[None, :, :]

    return kernel


def physics_core(params, slab, table, *, B, N, Npp, H, W, cfg, total_mass):
    """params: (8,) SMEM scalars; slab: (B, SLAB_ROWS, Npp); table: (B, 12, H*W)."""
    HW = H * W
    kernel = _make_physics_kernel(
        N=N, Npp=Npp, H=H, W=W,
        gravity=cfg.gravity, damping_alpha=cfg.damping_alpha,
        contact_temperature=cfg.contact_temperature,
        torque_limit=cfg.torque_limit, total_mass=total_mass)

    grid_spec = pltpu.PrefetchScalarGridSpec(
        num_scalar_prefetch=1,
        grid=(B,),
        in_specs=[pl.BlockSpec((1, SLAB_ROWS, Npp), lambda b, p: (b, 0, 0)),
                  pl.BlockSpec((1, 12, HW), lambda b, p: (b, 0, 0))],
        out_specs=pl.BlockSpec((1, OUT_ROWS, Npp), lambda b, p: (b, 0, 0)),
    )

    flops = int(B * (2 * 12 * HW * Npp + 2 * 6 * Npp * Npp + 400 * Npp))
    bytes_accessed = int(4 * (B * (SLAB_ROWS * Npp + 12 * HW + OUT_ROWS * Npp) + 8))
    return pl.pallas_call(
        kernel,
        out_shape=jax.ShapeDtypeStruct((B, OUT_ROWS, Npp), jnp.float32),
        grid_spec=grid_spec,
        compiler_params=pltpu.CompilerParams(
            dimension_semantics=("parallel",),          # v7x: use both TensorCores
            vmem_limit_bytes=32 * 1024 * 1024),         # v5e default is only 16 MiB
        cost_estimate=pl.CostEstimate(flops=flops, transcendentals=int(8 * B * Npp),
                                      bytes_accessed=bytes_accessed),
    )(params, slab, table)


# ----------------------------- engine (JAX glue around the kernel) -----------------------------

def assemble_and_transform_robot(state, controls, rm, cfg):
    """Coordinate-major assembly: returns (B,3,N) points/thrust, (B,3) cog,
    (B,3,3) inertia, (B,3) global driving dir — no point-major layouts."""
    B = cfg.num_robots
    Nd = rm.num_driving_parts
    Pd = rm.points_per_driving_part
    Nb = rm.body_points.shape[0]

    rots = rot_Y(state.thetas.reshape(-1, 1)).reshape(B, Nd, 3, 3)
    jpos_col = rm.joint_positions[:, :, None]                              # (Nd,3,1)

    local_pts_T = jnp.swapaxes(rm.joint_local_driving_part_pts, -1, -2)    # (Nd,3,Pd)
    rot_pts = rots @ local_pts_T[None] + jpos_col[None]                    # (B,Nd,3,Pd)
    jl_cogs = rm.joint_local_driving_part_cogs[:, :, None]                 # (Nd,3,1)
    rot_cogs = rots @ jl_cogs[None] + jpos_col[None]                       # (B,Nd,3,1)
    rot_inertias = rots @ rm.driving_part_inertias[None] @ jnp.swapaxes(rots, -1, -2)

    masses = rm.driving_part_masses.reshape(1, Nd, 1, 1)
    cog_overall = (jnp.sum(rot_cogs * masses, axis=1)
                   + rm.body_mass * rm.body_cog.reshape(1, 3, 1)) / rm.total_mass   # (B,3,1)

    I3 = jnp.eye(3, dtype=jnp.float32)
    d_driving = rot_cogs - cog_overall[:, None]                            # (B,Nd,3,1)
    d_body = rm.body_cog.reshape(1, 3, 1) - cog_overall                    # (B,3,1)
    d_driving_sq = jnp.sum(d_driving ** 2, axis=-2, keepdims=True)         # (B,Nd,1,1)
    tt_driving = (d_driving_sq * I3
                  - d_driving @ jnp.swapaxes(d_driving, -1, -2)) * masses  # (B,Nd,3,3)
    d_body_sq = jnp.sum(d_body ** 2, axis=-2, keepdims=True)               # (B,1,1)
    tt_body = (d_body_sq * I3 - d_body @ jnp.swapaxes(d_body, -1, -2)) * rm.body_mass
    I_overall = (jnp.sum(rot_inertias + tt_driving, axis=1)
                 + rm.body_inertia[None] + tt_body)                        # (B,3,3)

    R_world = q_to_R(state.q)                                              # (B,3,3)
    cog_world = (R_world @ cog_overall + state.x[:, :, None])[..., 0]      # (B,3)
    I_world = R_world @ I_overall @ jnp.swapaxes(R_world, -1, -2)          # (B,3,3)
    gdd = (R_world @ rm.driving_direction.reshape(1, 3, 1))[..., 0]        # (B,3)

    driving_world = R_world[:, None] @ rot_pts + state.x[:, None, :, None] # (B,Nd,3,Pd)
    driving_world = jnp.transpose(driving_world, (0, 2, 1, 3)).reshape(B, 3, Nd * Pd)
    body_world = R_world @ jnp.swapaxes(rm.body_points, -1, -2)[None] + state.x[:, :, None]

    thrust_T = jnp.swapaxes(rm.thrust_directions, -1, -2)                  # (Nd,3,Pd)
    thrust_world = (R_world[:, None] @ rots) @ thrust_T[None]              # (B,Nd,3,Pd)
    velocity_cmd = jnp.clip(controls[:, :Nd], -rm.v_max, rm.v_max)
    thrust_world = thrust_world * velocity_cmd[:, :, None, None]
    thrust_world = jnp.transpose(thrust_world, (0, 2, 1, 3)).reshape(B, 3, Nd * Pd)

    robot_points_c = jnp.concatenate([driving_world, body_world], axis=2)  # (B,3,N)
    thrust_vectors_c = jnp.concatenate(
        [thrust_world, jnp.zeros((B, 3, Nb), dtype=thrust_world.dtype)], axis=2)

    return robot_points_c, thrust_vectors_c, cog_world, I_world, gdd


def dphysics_forward(state, controls, terrain, *, rm, cfg):
    B = cfg.num_robots
    Nd = rm.num_driving_parts

    # ---- assembly (tiny 3x3 matmuls, glue), coordinate-major layouts ----
    robot_points_c, thrust_vectors_c, cog_world, inertia, gdd = \
        assemble_and_transform_robot(state, controls, rm, cfg)
    N = robot_points_c.shape[-1]
    _, H, W = terrain.z_grid.shape
    HW = H * W

    Npp = ((N + 127) // 128) * 128          # per-robot lane width, multiple of 128
    pad = Npp - N

    rp_p = jnp.pad(robot_points_c, ((0, 0), (0, 0), (0, pad)))
    tv_p = jnp.pad(thrust_vectors_c, ((0, 0), (0, 0), (0, pad)))

    def bcast(v):  # (B,3) -> (B,3,Npp)
        return jnp.broadcast_to(v[:, :, None], (B, 3, Npp))

    valid = jnp.broadcast_to(
        (jnp.arange(Npp) < N).astype(jnp.float32)[None, None, :], (B, 1, Npp))
    slab = jnp.concatenate(
        [rp_p, tv_p, bcast(state.xd), bcast(state.omega), bcast(cog_world),
         bcast(gdd), valid], axis=1).astype(jnp.float32)                   # (B,19,Npp)

    # pre-shifted 12-row terrain table: [z, dz/dx, dz/dy] at offsets {0, +1, +W, +W+1}
    base = jnp.concatenate(
        [terrain.z_grid.reshape(B, 1, HW),
         terrain.z_grid_grad.reshape(B, 2, HW)], axis=1).astype(jnp.float32)  # (B,3,HW)
    table = jnp.concatenate(
        [jnp.roll(base, -s, axis=2) for s in (0, 1, W, W + 1)], axis=1)    # (B,12,HW)

    # runtime terrain scalars -> SMEM via scalar prefetch (never float() a tracer)
    mc = jnp.asarray(terrain.max_coord, jnp.float32)
    params = jnp.stack([
        jnp.asarray(terrain.k_stiffness, jnp.float32),
        jnp.asarray(terrain.k_friction_lon, jnp.float32),
        jnp.asarray(terrain.k_friction_lat, jnp.float32),
        mc,
        (W - 1.0) * 0.5 / mc,
        (H - 1.0) * 0.5 / mc,
        jnp.asarray(0.0, jnp.float32),
        jnp.asarray(0.0, jnp.float32),
    ])

    out = physics_core(params, slab, table, B=B, N=N, Npp=Npp, H=H, W=W,
                       cfg=cfg, total_mass=rm.total_mass)                  # (B,16,Npp)

    F_spring = jnp.transpose(out[:, 0:3, :N], (0, 2, 1))   # (B,N,3) diagnostics
    F_friction = jnp.transpose(out[:, 3:6, :N], (0, 2, 1))
    in_contact = jnp.transpose(out[:, 6:7, :N], (0, 2, 1)) # (B,N,1)
    torque = out[:, 8:11, 0]                               # (B,3)
    xdd = out[:, 11:14, 0]                                 # (B,3)

    # TODO(synk): fold the 3x3 inertia solve, Euler state update and quaternion
    # integration into the kernel epilogue to drop the remaining tiny XLA ops.
    omega_d = solve3x3(inertia, torque)                    # adjugate solve, no LU call
    thetas_d = jnp.clip(controls[:, Nd:], -rm.joint_max_pivot_vels, rm.joint_max_pivot_vels)

    state_der = dict(
        xdd=xdd, omega_d=omega_d, thetas_d=thetas_d,
        f_spring=F_spring, f_friction=F_friction, in_contact=in_contact, torque=torque,
        robot_points=jnp.transpose(robot_points_c, (0, 2, 1)),
        thrust_vectors=jnp.transpose(thrust_vectors_c, (0, 2, 1)))

    # ---- state integration ----
    next_xd = state.xd + xdd * cfg.dt
    next_x = state.x + next_xd * cfg.dt
    next_thetas = jnp.clip(state.thetas + thetas_d * cfg.dt,
                           rm.joint_limits[0], rm.joint_limits[1])
    next_omega = state.omega + omega_d * cfg.dt
    next_q = integrate_quaternion(state.q, next_omega, cfg.dt)
    next_state = PhysicsState(x=next_x, xd=next_xd, q=next_q,
                              omega=next_omega, thetas=next_thetas)
    return next_state, state_der


# ----------------------------- deterministic setup & run -----------------------------

def build_everything():
    B = 2          # num_robots
    Nd = 2         # driving parts
    Pd = 8         # points per driving part
    Nb = 16        # body points
    H = W = 16

    key = jax.random.PRNGKey(0)
    keys = jax.random.split(key, 12)

    driving_part_masses = jnp.array([2.0, 2.0], dtype=jnp.float32)
    body_mass = 10.0
    total_mass = float(jnp.sum(driving_part_masses)) + body_mass

    rm = RobotModelConfig(
        num_driving_parts=Nd,
        points_per_driving_part=Pd,
        joint_positions=jnp.array([[0.2, 0.3, 0.0], [0.2, -0.3, 0.0]], dtype=jnp.float32),
        joint_local_driving_part_pts=0.1 * jax.random.normal(keys[0], (Nd, Pd, 3), jnp.float32),
        joint_local_driving_part_cogs=0.05 * jax.random.normal(keys[1], (Nd, 3), jnp.float32),
        driving_part_inertias=jnp.broadcast_to(0.05 * jnp.eye(3, dtype=jnp.float32), (Nd, 3, 3)),
        driving_part_masses=driving_part_masses,
        body_mass=body_mass,
        body_cog=jnp.array([0.0, 0.0, 0.05], dtype=jnp.float32),
        body_inertia=jnp.diag(jnp.array([0.5, 0.6, 0.7], dtype=jnp.float32)),
        body_points=0.25 * jax.random.normal(keys[2], (Nb, 3), jnp.float32),
        thrust_directions=jnp.broadcast_to(jnp.array([1.0, 0.0, 0.0], jnp.float32), (Nd, Pd, 3)),
        driving_direction=jnp.array([1.0, 0.0, 0.0], dtype=jnp.float32),
        v_max=1.0,
        joint_max_pivot_vels=0.5,
        joint_limits=(-0.6, 0.6),
        total_mass=total_mass,
    )

    cfg = PhysicsEngineConfig(num_robots=B)

    max_coord = 1.6
    xs = jnp.linspace(-max_coord, max_coord, W)
    ys = jnp.linspace(-max_coord, max_coord, H)
    X, Y = jnp.meshgrid(xs, ys, indexing="xy")      # z_grid[b, iy, ix]
    z0 = 0.05 * jnp.sin(2.0 * X) * jnp.cos(2.0 * Y)
    z_grid = jnp.stack([z0, z0 + 0.02], axis=0).astype(jnp.float32)           # (B,H,W)
    # analytic gradients of the synthetic heightfield (same for both robots)
    dz_dx = 0.10 * jnp.cos(2.0 * X) * jnp.cos(2.0 * Y)
    dz_dy = -0.10 * jnp.sin(2.0 * X) * jnp.sin(2.0 * Y)
    z_grid_grad = jnp.broadcast_to(
        jnp.stack([dz_dx, dz_dy], axis=0)[None], (B, 2, H, W)).astype(jnp.float32)

    terrain = TerrainConfig(z_grid=z_grid, z_grid_grad=z_grid_grad, max_coord=max_coord,
                            k_stiffness=1000.0, k_friction_lon=0.8, k_friction_lat=0.5)

    state = PhysicsState(
        x=jnp.array([[0.0, 0.0, 0.10], [0.1, 0.1, 0.12]], dtype=jnp.float32),
        xd=0.1 * jax.random.normal(keys[3], (B, 3), jnp.float32),
        q=jnp.broadcast_to(jnp.array([1.0, 0.0, 0.0, 0.0], jnp.float32), (B, 4)),
        omega=0.1 * jax.random.normal(keys[4], (B, 3), jnp.float32),
        thetas=0.2 * jax.random.normal(keys[5], (B, Nd), jnp.float32),
    )
    controls = jax.random.uniform(keys[6], (B, 2 * Nd), jnp.float32, minval=-1.0, maxval=1.0)
    return state, controls, terrain, rm, cfg


if __name__ == "__main__":
    state, controls, terrain, rm, cfg = build_everything()
    fwd = jax.jit(functools.partial(dphysics_forward, rm=rm, cfg=cfg))
    next_state, state_der = fwd(state, controls, terrain)
    jax.block_until_ready(next_state)
    jax.block_until_ready(state_der)
    print("KERNEL_OK")
</pallas_src>

<mosaic_0001>
module attributes {stable_mosaic.version = 11 : i64} {
  func.func @kernel(%arg0: i32, %arg1: memref<8xf32, #tpu.memory_space<smem>>, %arg2: memref<1x19x128xf32, #tpu.memory_space<vmem>>, %arg3: memref<1x12x256xf32, #tpu.memory_space<vmem>>, %arg4: memref<1x16x128xf32, #tpu.memory_space<vmem>>) attributes {dimension_semantics = [#tpu.dimension_semantics<parallel>], iteration_bounds = array<i64: 2>, scalar_prefetch = 1 : i64, scratch_operands = 0 : i64, tpu.core_type = #tpu.core_type<tc>, window_params = [{transform_indices = @transform_0, window_bounds = array<i64: 1, 19, 128>}, {transform_indices = @transform_1, window_bounds = array<i64: 1, 12, 256>}, {transform_indices = @transform_2, window_bounds = array<i64: 1, 16, 128>}]} {
    %c0 = arith.constant 0 : index
    %0 = memref.load %arg1[%c0] : memref<8xf32, #tpu.memory_space<smem>>
    %c1 = arith.constant 1 : index
    %1 = memref.load %arg1[%c1] : memref<8xf32, #tpu.memory_space<smem>>
    %c2 = arith.constant 2 : index
    %2 = memref.load %arg1[%c2] : memref<8xf32, #tpu.memory_space<smem>>
    %c3 = arith.constant 3 : index
    %3 = memref.load %arg1[%c3] : memref<8xf32, #tpu.memory_space<smem>>
    %c4 = arith.constant 4 : index
    %4 = memref.load %arg1[%c4] : memref<8xf32, #tpu.memory_space<smem>>
    %c5 = arith.constant 5 : index
    %5 = memref.load %arg1[%c5] : memref<8xf32, #tpu.memory_space<smem>>
    %c0_0 = arith.constant 0 : index
    %c0_1 = arith.constant 0 : index
    %c0_2 = arith.constant 0 : index
    %6 = vector.load %arg2[%c0_0, %c0_1, %c0_2] : memref<1x19x128xf32, #tpu.memory_space<vmem>>, vector<1x19x128xf32>
    %7 = vector.shape_cast %6 : vector<1x19x128xf32> to vector<19x128xf32>
    %8 = vector.extract_strided_slice %7 {offsets = [0, 0], sizes = [3, 128], strides = [1, 1]} : vector<19x128xf32> to vector<3x128xf32>
    %9 = vector.extract_strided_slice %7 {offsets = [3, 0], sizes = [3, 128], strides = [1, 1]} : vector<19x128xf32> to vector<3x128xf32>
    %10 = vector.extract_strided_slice %7 {offsets = [6, 0], sizes = [3, 128], strides = [1, 1]} : vector<19x128xf32> to vector<3x128xf32>
    %11 = vector.extract_strided_slice %7 {offsets = [9, 0], sizes = [3, 128], strides = [1, 1]} : vector<19x128xf32> to vector<3x128xf32>
    %12 = vector.extract_strided_slice %7 {offsets = [12, 0], sizes = [3, 128], strides = [1, 1]} : vector<19x128xf32> to vector<3x128xf32>
    %13 = vector.extract_strided_slice %7 {offsets = [15, 0], sizes = [3, 128], strides = [1, 1]} : vector<19x128xf32> to vector<3x128xf32>
    %14 = vector.extract_strided_slice %7 {offsets = [18, 0], sizes = [1, 128], strides = [1, 1]} : vector<19x128xf32> to vector<1x128xf32>
    %15 = vector.extract_strided_slice %8 {offsets = [0, 0], sizes = [1, 128], strides = [1, 1]} : vector<3x128xf32> to vector<1x128xf32>
    %16 = vector.broadcast %3 : f32 to vector<1x128xf32>
    %17 = arith.addf %15, %16 : vector<1x128xf32>
    %18 = vector.broadcast %4 : f32 to vector<1x128xf32>
    %19 = arith.mulf %17, %18 : vector<1x128xf32>
    %cst = arith.constant 0.000000e+00 : f32
    %cst_3 = arith.constant 1.500000e+01 : f32
    %20 = vector.broadcast %cst : f32 to vector<1x128xf32>
    %21 = arith.maximumf %20, %19 : vector<1x128xf32>
    %22 = vector.broadcast %cst_3 : f32 to vector<1x128xf32>
    %23 = arith.minimumf %22, %21 : vector<1x128xf32>
    %24 = vector.extract_strided_slice %8 {offsets = [1, 0], sizes = [1, 128], strides = [1, 1]} : vector<3x128xf32> to vector<1x128xf32>
    %25 = vector.broadcast %3 : f32 to vector<1x128xf32>
    %26 = arith.addf %24, %25 : vector<1x128xf32>
    %27 = vector.broadcast %5 : f32 to vector<1x128xf32>
    %28 = arith.mulf %26, %27 : vector<1x128xf32>
    %cst_4 = arith.constant 0.000000e+00 : f32
    %cst_5 = arith.constant 1.500000e+01 : f32
    %29 = vector.broadcast %cst_4 : f32 to vector<1x128xf32>
    %30 = arith.maximumf %29, %28 : vector<1x128xf32>
    %31 = vector.broadcast %cst_5 : f32 to vector<1x128xf32>
    %32 = arith.minimumf %31, %30 : vector<1x128xf32>
    %33 = math.floor %23 : vector<1x128xf32>
    %34 = arith.fptosi %33 : vector<1x128xf32> to vector<1x128xi32>
    %c0_i32 = arith.constant 0 : i32
    %c14_i32 = arith.constant 14 : i32
    %35 = vector.broadcast %c0_i32 : i32 to vector<1x128xi32>
    %36 = arith.maxsi %35, %34 : vector<1x128xi32>
    %37 = vector.broadcast %c14_i32 : i32 to vector<1x128xi32>
    %38 = arith.minsi %37, %36 : vector<1x128xi32>
    %39 = math.floor %32 : vector<1x128xf32>
    %40 = arith.fptosi %39 : vector<1x128xf32> to vector<1x128xi32>
    %c0_i32_6 = arith.constant 0 : i32
    %c14_i32_7 = arith.constant 14 : i32
    %41 = vector.broadcast %c0_i32_6 : i32 to vector<1x128xi32>
    %42 = arith.maxsi %41, %40 : vector<1x128xi32>
    %43 = vector.broadcast %c14_i32_7 : i32 to vector<1x128xi32>
    %44 = arith.minsi %43, %42 : vector<1x128xi32>
    %45 = arith.sitofp %38 : vector<1x128xi32> to vector<1x128xf32>
    %46 = arith.subf %23, %45 : vector<1x128xf32>
    %47 = arith.sitofp %44 : vector<1x128xi32> to vector<1x128xf32>
    %48 = arith.subf %32, %47 : vector<1x128xf32>
    %c16_i32 = arith.constant 16 : i32
    %49 = vector.broadcast %c16_i32 : i32 to vector<1x128xi32>
    %50 = arith.muli %44, %49 : vector<1x128xi32>
    %51 = arith.addi %50, %38 : vector<1x128xi32>
    %52 = tpu.iota {dimensions = array<i32: 0>} : vector<256x128xi32>
    %53 = vector.broadcast %51 : vector<1x128xi32> to vector<256x128xi32>
    %54 = arith.cmpi eq, %52, %53 : vector<256x128xi32>
    %cst_8 = arith.constant 1.000000e+00 : f32
    %cst_9 = arith.constant 0.000000e+00 : f32
    %55 = vector.broadcast %cst_8 : f32 to vector<256x128xf32>
    %56 = vector.broadcast %cst_9 : f32 to vector<256x128xf32>
    %57 = arith.select %54, %55, %56 : vector<256x128xi1>, vector<256x128xf32>
    %c0_10 = arith.constant 0 : index
    %c0_11 = arith.constant 0 : index
    %c0_12 = arith.constant 0 : index
    %58 = vector.load %arg3[%c0_10, %c0_11, %c0_12] : memref<1x12x256xf32, #tpu.memory_space<vmem>>, vector<1x12x256xf32>
    %59 = vector.shape_cast %58 : vector<1x12x256xf32> to vector<12x256xf32>
    %cst_13 = arith.constant dense<0.000000e+00> : vector<12x128xf32>
    %60 = tpu.matmul %59, %57, %cst_13 {dimension_numbers = #tpu.dot_dimension_numbers<[1], [0], [0], [1], [0, 0, 1, 1], [], []>} : vector<12x256xf32>, vector<256x128xf32>, vector<12x128xf32> -> vector<12x128xf32>
    %cst_14 = arith.constant 1.000000e+00 : f32
    %61 = vector.broadcast %cst_14 : f32 to vector<1x128xf32>
    %62 = arith.subf %61, %46 : vector<1x128xf32>
    %cst_15 = arith.constant 1.000000e+00 : f32
    %63 = vector.broadcast %cst_15 : f32 to vector<1x128xf32>
    %64 = arith.subf %63, %48 : vector<1x128xf32>
    %65 = arith.mulf %62, %64 : vector<1x128xf32>
    %cst_16 = arith.constant 1.000000e+00 : f32
    %66 = vector.broadcast %cst_16 : f32 to vector<1x128xf32>
    %67 = arith.subf %66, %48 : vector<1x128xf32>
    %68 = arith.mulf %46, %67 : vector<1x128xf32>
    %cst_17 = arith.constant 1.000000e+00 : f32
    %69 = vector.broadcast %cst_17 : f32 to vector<1x128xf32>
    %70 = arith.subf %69, %46 : vector<1x128xf32>
    %71 = arith.mulf %70, %48 : vector<1x128xf32>
    %72 = arith.mulf %46, %48 : vector<1x128xf32>
    %73 = vector.extract_strided_slice %60 {offsets = [0, 0], sizes = [3, 128], strides = [1, 1]} : vector<12x128xf32> to vector<3x128xf32>
    %74 = vector.broadcast %65 : vector<1x128xf32> to vector<3x128xf32>
    %75 = arith.mulf %74, %73 : vector<3x128xf32>
    %76 = vector.extract_strided_slice %60 {offsets = [3, 0], sizes = [3, 128], strides = [1, 1]} : vector<12x128xf32> to vector<3x128xf32>
    %77 = vector.broadcast %68 : vector<1x128xf32> to vector<3x128xf32>
    %78 = arith.mulf %77, %76 : vector<3x128xf32>
    %79 = arith.addf %75, %78 : vector<3x128xf32>
    %80 = vector.extract_strided_slice %60 {offsets = [6, 0], sizes = [3, 128], strides = [1, 1]} : vector<12x128xf32> to vector<3x128xf32>
    %81 = vector.broadcast %71 : vector<1x128xf32> to vector<3x128xf32>
    %82 = arith.mulf %81, %80 : vector<3x128xf32>
    %83 = arith.addf %79, %82 : vector<3x128xf32>
    %84 = vector.extract_strided_slice %60 {offsets = [9, 0], sizes = [3, 128], strides = [1, 1]} : vector<12x128xf32> to vector<3x128xf32>
    %85 = vector.broadcast %72 : vector<1x128xf32> to vector<3x128xf32>
    %86 = arith.mulf %85, %84 : vector<3x128xf32>
    %87 = arith.addf %83, %86 : vector<3x128xf32>
    %88 = vector.extract_strided_slice %87 {offsets = [0, 0], sizes = [1, 128], strides = [1, 1]} : vector<3x128xf32> to vector<1x128xf32>
    %89 = vector.extract_strided_slice %87 {offsets = [1, 0], sizes = [1, 128], strides = [1, 1]} : vector<3x128xf32> to vector<1x128xf32>
    %90 = vector.extract_strided_slice %87 {offsets = [2, 0], sizes = [1, 128], strides = [1, 1]} : vector<3x128xf32> to vector<1x128xf32>
    %91 = arith.mulf %89, %89 : vector<1x128xf32>
    %92 = arith.mulf %90, %90 : vector<1x128xf32>
    %93 = arith.addf %91, %92 : vector<1x128xf32>
    %cst_18 = arith.constant 1.000000e+00 : f32
    %94 = vector.broadcast %cst_18 : f32 to vector<1x128xf32>
    %95 = arith.addf %93, %94 : vector<1x128xf32>
    %96 = math.rsqrt %95 : vector<1x128xf32>
    %cst_19 = arith.constant 0.000000e+00 : f32
    %97 = vector.broadcast %cst_19 : f32 to vector<1x128xf32>
    %98 = arith.subf %97, %89 : vector<1x128xf32>
    %cst_20 = arith.constant 0.000000e+00 : f32
    %99 = vector.broadcast %cst_20 : f32 to vector<1x128xf32>
    %100 = arith.subf %99, %90 : vector<1x128xf32>
    %cst_21 = arith.constant 1.000000e+00 : f32
    %101 = vector.broadcast %cst_21 : f32 to vector<1x128xf32>
    %102 = tpu.concatenate %98, %100, %101 in 0 : vector<1x128xf32>, vector<1x128xf32>, vector<1x128xf32> -> vector<3x128xf32>
    %103 = vector.broadcast %96 : vector<1x128xf32> to vector<3x128xf32>
    %104 = arith.mulf %102, %103 : vector<3x128xf32>
    %105 = vector.extract_strided_slice %104 {offsets = [2, 0], sizes = [1, 128], strides = [1, 1]} : vector<3x128xf32> to vector<1x128xf32>
    %106 = vector.extract_strided_slice %8 {offsets = [2, 0], sizes = [1, 128], strides = [1, 1]} : vector<3x128xf32> to vector<1x128xf32>
    %107 = arith.subf %106, %88 : vector<1x128xf32>
    %108 = arith.mulf %107, %105 : vector<1x128xf32>
    %cst_22 = arith.constant 2.000000e+01 : f32
    %109 = vector.broadcast %cst_22 : f32 to vector<1x128xf32>
    %110 = arith.mulf %108, %109 : vector<1x128xf32>
    %111 = math.absf %110 : vector<1x128xf32>
    %cst_23 = arith.constant 0.000000e+00 : f32
    %112 = vector.broadcast %cst_23 : f32 to vector<1x128xf32>
    %113 = arith.subf %112, %111 : vector<1x128xf32>
    %114 = math.exp %113 : vector<1x128xf32>
    %cst_24 = arith.constant 1.000000e+00 : f32
    %115 = vector.broadcast %cst_24 : f32 to vector<1x128xf32>
    %116 = arith.addf %115, %114 : vector<1x128xf32>
    %117 = tpu.reciprocal %116 {approx = true} : vector<1x128xf32> -> vector<1x128xf32>
    %cst_25 = arith.constant 0.000000e+00 : f32
    %118 = vector.broadcast %cst_25 : f32 to vector<1x128xf32>
    %119 = arith.cmpf oge, %110, %118 : vector<1x128xf32>
    %120 = arith.mulf %114, %117 : vector<1x128xf32>
    %121 = arith.select %119, %120, %117 : vector<1x128xi1>, vector<1x128xf32>
    %122 = arith.mulf %121, %14 : vector<1x128xf32>
    %123 = arith.mulf %108, %122 : vector<1x128xf32>
    %124 = arith.subf %8, %12 : vector<3x128xf32>
    %125 = vector.extract_strided_slice %11 {offsets = [0, 0], sizes = [1, 128], strides = [1, 1]} : vector<3x128xf32> to vector<1x128xf32>
    %126 = vector.extract_strided_slice %11 {offsets = [1, 0], sizes = [1, 128], strides = [1, 1]} : vector<3x128xf32> to vector<1x128xf32>
    %127 = vector.extract_strided_slice %11 {offsets = [2, 0], sizes = [1, 128], strides = [1, 1]} : vector<3x128xf32> to vector<1x128xf32>
    %128 = vector.extract_strided_slice %124 {offsets = [0, 0], sizes = [1, 128], strides = [1, 1]} : vector<3x128xf32> to vector<1x128xf32>
    %129 = vector.extract_strided_slice %124 {offsets = [1, 0], sizes = [1, 128], strides = [1, 1]} : vector<3x128xf32> to vector<1x128xf32>
    %130 = vector.extract_strided_slice %124 {offsets = [2, 0], sizes = [1, 128], strides = [1, 1]} : vector<3x128xf32> to vector<1x128xf32>
    %131 = arith.mulf %126, %130 : vector<1x128xf32>
    %132 = arith.mulf %127, %129 : vector<1x128xf32>
    %133 = arith.subf %131, %132 : vector<1x128xf32>
    %134 = arith.mulf %127, %128 : vector<1x128xf32>
    %135 = arith.mulf %125, %130 : vector<1x128xf32>
    %136 = arith.subf %134, %135 : vector<1x128xf32>
    %137 = arith.mulf %125, %129 : vector<1x128xf32>
    %138 = arith.mulf %126, %128 : vector<1x128xf32>
    %139 = arith.subf %137, %138 : vector<1x128xf32>
    %140 = tpu.concatenate %133, %136, %139 in 0 : vector<1x128xf32>, vector<1x128xf32>, vector<1x128xf32> -> vector<3x128xf32>
    %141 = arith.addf %10, %140 : vector<3x128xf32>
    %cst_26 = arith.constant dense<0.000000e+00> : vector<1xf32>
    %142 = vector.multi_reduction <add>, %122, %cst_26 [1] : vector<1x128xf32> to vector<1xf32>
    %143 = vector.shape_cast %142 : vector<1xf32> to vector<1x1xf32>
    %cst_27 = arith.constant 1.000000e+00 : f32
    %144 = vector.broadcast %cst_27 : f32 to vector<1x1xf32>
    %145 = arith.maximumf %143, %144 : vector<1x1xf32>
    %146 = tpu.reciprocal %145 {approx = true} : vector<1x1xf32> -> vector<1x1xf32>
    %147 = vector.extract_strided_slice %141 {offsets = [0, 0], sizes = [1, 128], strides = [1, 1]} : vector<3x128xf32> to vector<1x128xf32>
    %148 = vector.extract_strided_slice %104 {offsets = [0, 0], sizes = [1, 128], strides = [1, 1]} : vector<3x128xf32> to vector<1x128xf32>
    %149 = arith.mulf %147, %148 : vector<1x128xf32>
    %150 = vector.extract_strided_slice %141 {offsets = [1, 0], sizes = [1, 128], strides = [1, 1]} : vector<3x128xf32> to vector<1x128xf32>
    %151 = vector.extract_strided_slice %104 {offsets = [1, 0], sizes = [1, 128], strides = [1, 1]} : vector<3x128xf32> to vector<1x128xf32>
    %152 = arith.mulf %150, %151 : vector<1x128xf32>
    %153 = arith.addf %149, %152 : vector<1x128xf32>
    %154 = vector.extract_strided_slice %141 {offsets = [2, 0], sizes = [1, 128], strides = [1, 1]} : vector<3x128xf32> to vector<1x128xf32>
    %155 = vector.extract_strided_slice %104 {offsets = [2, 0], sizes = [1, 128], strides = [1, 1]} : vector<3x128xf32> to vector<1x128xf32>
    %156 = arith.mulf %154, %155 : vector<1x128xf32>
    %157 = arith.addf %153, %156 : vector<1x128xf32>
    %cst_28 = arith.constant 1.400000e+01 : f32
    %158 = arith.mulf %cst_28, %0 : f32
    %159 = vector.broadcast %158 : f32 to vector<1x1xf32>
    %160 = arith.mulf %159, %146 : vector<1x1xf32>
    %161 = math.sqrt %160 : vector<1x1xf32>
    %cst_29 = arith.constant 2.000000e+00 : f32
    %162 = vector.broadcast %cst_29 : f32 to vector<1x1xf32>
    %163 = arith.mulf %162, %161 : vector<1x1xf32>
    %164 = vector.broadcast %0 : f32 to vector<1x128xf32>
    %165 = arith.mulf %164, %123 : vector<1x128xf32>
    %166 = vector.broadcast %163 : vector<1x1xf32> to vector<1x128xf32>
    %167 = arith.mulf %166, %157 : vector<1x128xf32>
    %168 = arith.addf %165, %167 : vector<1x128xf32>
    %cst_30 = arith.constant 0.000000e+00 : f32
    %169 = vector.broadcast %cst_30 : f32 to vector<1x128xf32>
    %170 = arith.subf %169, %168 : vector<1x128xf32>
    %171 = arith.mulf %170, %122 : vector<1x128xf32>
    %172 = vector.broadcast %146 : vector<1x1xf32> to vector<1x128xf32>
    %173 = arith.mulf %171, %172 : vector<1x128xf32>
    %174 = vector.broadcast %173 : vector<1x128xf32> to vector<3x128xf32>
    %175 = arith.mulf %174, %104 : vector<3x128xf32>
    %176 = math.absf %173 : vector<1x128xf32>
    %177 = vector.extract_strided_slice %13 {offsets = [0, 0], sizes = [1, 128], strides = [1, 1]} : vector<3x128xf32> to vector<1x128xf32>
    %178 = vector.extract_strided_slice %104 {offsets = [0, 0], sizes = [1, 128], strides = [1, 1]} : vector<3x128xf32> to vector<1x128xf32>
    %179 = arith.mulf %177, %178 : vector<1x128xf32>
    %180 = vector.extract_strided_slice %13 {offsets = [1, 0], sizes = [1, 128], strides = [1, 1]} : vector<3x128xf32> to vector<1x128xf32>
    %181 = vector.extract_strided_slice %104 {offsets = [1, 0], sizes = [1, 128], strides = [1, 1]} : vector<3x128xf32> to vector<1x128xf32>
    %182 = arith.mulf %180, %181 : vector<1x128xf32>
    %183 = arith.addf %179, %182 : vector<1x128xf32>
    %184 = vector.extract_strided_slice %13 {offsets = [2, 0], sizes = [1, 128], strides = [1, 1]} : vector<3x128xf32> to vector<1x128xf32>
    %185 = vector.extract_strided_slice %104 {offsets = [2, 0], sizes = [1, 128], strides = [1, 1]} : vector<3x128xf32> to vector<1x128xf32>
    %186 = arith.mulf %184, %185 : vector<1x128xf32>
    %187 = arith.addf %183, %186 : vector<1x128xf32>
    %188 = vector.broadcast %187 : vector<1x128xf32> to vector<3x128xf32>
    %189 = arith.mulf %188, %104 : vector<3x128xf32>
    %190 = arith.subf %13, %189 : vector<3x128xf32>
    %191 = vector.extract_strided_slice %190 {offsets = [0, 0], sizes = [1, 128], strides = [1, 1]} : vector<3x128xf32> to vector<1x128xf32>
    %192 = vector.extract_strided_slice %190 {offsets = [0, 0], sizes = [1, 128], strides = [1, 1]} : vector<3x128xf32> to vector<1x128xf32>
    %193 = arith.mulf %191, %192 : vector<1x128xf32>
    %194 = vector.extract_strided_slice %190 {offsets = [1, 0], sizes = [1, 128], strides = [1, 1]} : vector<3x128xf32> to vector<1x128xf32>
    %195 = vector.extract_strided_slice %190 {offsets = [1, 0], sizes = [1, 128], strides = [1, 1]} : vector<3x128xf32> to vector<1x128xf32>
    %196 = arith.mulf %194, %195 : vector<1x128xf32>
    %197 = arith.addf %193, %196 : vector<1x128xf32>
    %198 = vector.extract_strided_slice %190 {offsets = [2, 0], sizes = [1, 128], strides = [1, 1]} : vector<3x128xf32> to vector<1x128xf32>
    %199 = vector.extract_strided_slice %190 {offsets = [2, 0], sizes = [1, 128], strides = [1, 1]} : vector<3x128xf32> to vector<1x128xf32>
    %200 = arith.mulf %198, %199 : vector<1x128xf32>
    %201 = arith.addf %197, %200 : vector<1x128xf32>
    %cst_31 = arith.constant 1.000000e-18 : f32
    %202 = vector.broadcast %cst_31 : f32 to vector<1x128xf32>
    %203 = arith.maximumf %201, %202 : vector<1x128xf32>
    %204 = math.rsqrt %203 : vector<1x128xf32>
    %205 = vector.broadcast %204 : vector<1x128xf32> to vector<3x128xf32>
    %206 = arith.mulf %190, %205 : vector<3x128xf32>
    %207 = vector.extract_strided_slice %206 {offsets = [0, 0], sizes = [1, 128], strides = [1, 1]} : vector<3x128xf32> to vector<1x128xf32>
    %208 = vector.extract_strided_slice %206 {offsets = [1, 0], sizes = [1, 128], strides = [1, 1]} : vector<3x128xf32> to vector<1x128xf32>
    %209 = vector.extract_strided_slice %206 {offsets = [2, 0], sizes = [1, 128], strides = [1, 1]} : vector<3x128xf32> to vector<1x128xf32>
    %210 = vector.extract_strided_slice %104 {offsets = [0, 0], sizes = [1, 128], strides = [1, 1]} : vector<3x128xf32> to vector<1x128xf32>
    %211 = vector.extract_strided_slice %104 {offsets = [1, 0], sizes = [1, 128], strides = [1, 1]} : vector<3x128xf32> to vector<1x128xf32>
    %212 = vector.extract_strided_slice %104 {offsets = [2, 0], sizes = [1, 128], strides = [1, 1]} : vector<3x128xf32> to vector<1x128xf32>
    %213 = arith.mulf %208, %212 : vector<1x128xf32>
    %214 = arith.mulf %209, %211 : vector<1x128xf32>
    %215 = arith.subf %213, %214 : vector<1x128xf32>
    %216 = arith.mulf %209, %210 : vector<1x128xf32>
    %217 = arith.mulf %207, %212 : vector<1x128xf32>
    %218 = arith.subf %216, %217 : vector<1x128xf32>
    %219 = arith.mulf %207, %211 : vector<1x128xf32>
    %220 = arith.mulf %208, %210 : vector<1x128xf32>
    %221 = arith.subf %219, %220 : vector<1x128xf32>
    %222 = tpu.concatenate %215, %218, %221 in 0 : vector<1x128xf32>, vector<1x128xf32>, vector<1x128xf32> -> vector<3x128xf32>
    %223 = vector.extract_strided_slice %222 {offsets = [0, 0], sizes = [1, 128], strides = [1, 1]} : vector<3x128xf32> to vector<1x128xf32>
    %224 = vector.extract_strided_slice %222 {offsets = [0, 0], sizes = [1, 128], strides = [1, 1]} : vector<3x128xf32> to vector<1x128xf32>
    %225 = arith.mulf %223, %224 : vector<1x128xf32>
    %226 = vector.extract_strided_slice %222 {offsets = [1, 0], sizes = [1, 128], strides = [1, 1]} : vector<3x128xf32> to vector<1x128xf32>
    %227 = vector.extract_strided_slice %222 {offsets = [1, 0], sizes = [1, 128], strides = [1, 1]} : vector<3x128xf32> to vector<1x128xf32>
    %228 = arith.mulf %226, %227 : vector<1x128xf32>
    %229 = arith.addf %225, %228 : vector<1x128xf32>
    %230 = vector.extract_strided_slice %222 {offsets = [2, 0], sizes = [1, 128], strides = [1, 1]} : vector<3x128xf32> to vector<1x128xf32>
    %231 = vector.extract_strided_slice %222 {offsets = [2, 0], sizes = [1, 128], strides = [1, 1]} : vector<3x128xf32> to vector<1x128xf32>
    %232 = arith.mulf %230, %231 : vector<1x128xf32>
    %233 = arith.addf %229, %232 : vector<1x128xf32>
    %cst_32 = arith.constant 1.000000e-18 : f32
    %234 = vector.broadcast %cst_32 : f32 to vector<1x128xf32>
    %235 = arith.maximumf %233, %234 : vector<1x128xf32>
    %236 = math.rsqrt %235 : vector<1x128xf32>
    %237 = vector.broadcast %236 : vector<1x128xf32> to vector<3x128xf32>
    %238 = arith.mulf %222, %237 : vector<3x128xf32>
    %239 = arith.subf %9, %141 : vector<3x128xf32>
    %240 = vector.extract_strided_slice %239 {offsets = [0, 0], sizes = [1, 128], strides = [1, 1]} : vector<3x128xf32> to vector<1x128xf32>
    %241 = vector.extract_strided_slice %104 {offsets = [0, 0], sizes = [1, 128], strides = [1, 1]} : vector<3x128xf32> to vector<1x128xf32>
    %242 = arith.mulf %240, %241 : vector<1x128xf32>
    %243 = vector.extract_strided_slice %239 {offsets = [1, 0], sizes = [1, 128], strides = [1, 1]} : vector<3x128xf32> to vector<1x128xf32>
    %244 = vector.extract_strided_slice %104 {offsets = [1, 0], sizes = [1, 128], strides = [1, 1]} : vector<3x128xf32> to vector<1x128xf32>
    %245 = arith.mulf %243, %244 : vector<1x128xf32>
    %246 = arith.addf %242, %245 : vector<1x128xf32>
    %247 = vector.extract_strided_slice %239 {offsets = [2, 0], sizes = [1, 128], strides = [1, 1]} : vector<3x128xf32> to vector<1x128xf32>
    %248 = vector.extract_strided_slice %104 {offsets = [2, 0], sizes = [1, 128], strides = [1, 1]} : vector<3x128xf32> to vector<1x128xf32>
    %249 = arith.mulf %247, %248 : vector<1x128xf32>
    %250 = arith.addf %246, %249 : vector<1x128xf32>
    %251 = vector.broadcast %250 : vector<1x128xf32> to vector<3x128xf32>
    %252 = arith.mulf %251, %104 : vector<3x128xf32>
    %253 = arith.subf %239, %252 : vector<3x128xf32>
    %254 = math.tanh %253 : vector<3x128xf32>
    %255 = vector.extract_strided_slice %254 {offsets = [0, 0], sizes = [1, 128], strides = [1, 1]} : vector<3x128xf32> to vector<1x128xf32>
    %256 = vector.extract_strided_slice %206 {offsets = [0, 0], sizes = [1, 128], strides = [1, 1]} : vector<3x128xf32> to vector<1x128xf32>
    %257 = arith.mulf %255, %256 : vector<1x128xf32>
    %258 = vector.extract_strided_slice %254 {offsets = [1, 0], sizes = [1, 128], strides = [1, 1]} : vector<3x128xf32> to vector<1x128xf32>
    %259 = vector.extract_strided_slice %206 {offsets = [1, 0], sizes = [1, 128], strides = [1, 1]} : vector<3x128xf32> to vector<1x128xf32>
    %260 = arith.mulf %258, %259 : vector<1x128xf32>
    %261 = arith.addf %257, %260 : vector<1x128xf32>
    %262 = vector.extract_strided_slice %254 {offsets = [2, 0], sizes = [1, 128], strides = [1, 1]} : vector<3x128xf32> to vector<1x128xf32>
    %263 = vector.extract_strided_slice %206 {offsets = [2, 0], sizes = [1, 128], strides = [1, 1]} : vector<3x128xf32> to vector<1x128xf32>
    %264 = arith.mulf %262, %263 : vector<1x128xf32>
    %265 = arith.addf %261, %264 : vector<1x128xf32>
    %266 = vector.broadcast %265 : vector<1x128xf32> to vector<3x128xf32>
    %267 = arith.mulf %266, %206 : vector<3x128xf32>
    %268 = vector.extract_strided_slice %254 {offsets = [0, 0], sizes = [1, 128], strides = [1, 1]} : vector<3x128xf32> to vector<1x128xf32>
    %269 = vector.extract_strided_slice %238 {offsets = [0, 0], sizes = [1, 128], strides = [1, 1]} : vector<3x128xf32> to vector<1x128xf32>
    %270 = arith.mulf %268, %269 : vector<1x128xf32>
    %271 = vector.extract_strided_slice %254 {offsets = [1, 0], sizes = [1, 128], strides = [1, 1]} : vector<3x128xf32> to vector<1x128xf32>
    %272 = vector.extract_strided_slice %238 {offsets = [1, 0], sizes = [1, 128], strides = [1, 1]} : vector<3x128xf32> to vector<1x128xf32>
    %273 = arith.mulf %271, %272 : vector<1x128xf32>
    %274 = arith.addf %270, %273 : vector<1x128xf32>
    %275 = vector.extract_strided_slice %254 {offsets = [2, 0], sizes = [1, 128], strides = [1, 1]} : vector<3x128xf32> to vector<1x128xf32>
    %276 = vector.extract_strided_slice %238 {offsets = [2, 0], sizes = [1, 128], strides = [1, 1]} : vector<3x128xf32> to vector<1x128xf32>
    %277 = arith.mulf %275, %276 : vector<1x128xf32>
    %278 = arith.addf %274, %277 : vector<1x128xf32>
    %279 = vector.broadcast %278 : vector<1x128xf32> to vector<3x128xf32>
    %280 = arith.mulf %279, %238 : vector<3x128xf32>
    %281 = vector.broadcast %1 : f32 to vector<3x128xf32>
    %282 = arith.mulf %281, %267 : vector<3x128xf32>
    %283 = vector.broadcast %2 : f32 to vector<3x128xf32>
    %284 = arith.mulf %283, %280 : vector<3x128xf32>
    %285 = arith.addf %282, %284 : vector<3x128xf32>
    %286 = vector.broadcast %176 : vector<1x128xf32> to vector<3x128xf32>
    %287 = arith.mulf %285, %286 : vector<3x128xf32>
    %288 = arith.addf %175, %287 : vector<3x128xf32>
    %289 = vector.extract_strided_slice %124 {offsets = [0, 0], sizes = [1, 128], strides = [1, 1]} : vector<3x128xf32> to vector<1x128xf32>
    %290 = vector.extract_strided_slice %124 {offsets = [1, 0], sizes = [1, 128], strides = [1, 1]} : vector<3x128xf32> to vector<1x128xf32>
    %291 = vector.extract_strided_slice %124 {offsets = [2, 0], sizes = [1, 128], strides = [1, 1]} : vector<3x128xf32> to vector<1x128xf32>
    %292 = vector.extract_strided_slice %288 {offsets = [0, 0], sizes = [1, 128], strides = [1, 1]} : vector<3x128xf32> to vector<1x128xf32>
    %293 = vector.extract_strided_slice %288 {offsets = [1, 0], sizes = [1, 128], strides = [1, 1]} : vector<3x128xf32> to vector<1x128xf32>
    %294 = vector.extract_strided_slice %288 {offsets = [2, 0], sizes = [1, 128], strides = [1, 1]} : vector<3x128xf32> to vector<1x128xf32>
    %295 = arith.mulf %290, %294 : vector<1x128xf32>
    %296 = arith.mulf %291, %293 : vector<1x128xf32>
    %297 = arith.subf %295, %296 : vector<1x128xf32>
    %298 = arith.mulf %291, %292 : vector<1x128xf32>
    %299 = arith.mulf %289, %294 : vector<1x128xf32>
    %300 = arith.subf %298, %299 : vector<1x128xf32>
    %301 = arith.mulf %289, %293 : vector<1x128xf32>
    %302 = arith.mulf %290, %292 : vector<1x128xf32>
    %303 = arith.subf %301, %302 : vector<1x128xf32>
    %304 = tpu.concatenate %297, %300, %303 in 0 : vector<1x128xf32>, vector<1x128xf32>, vector<1x128xf32> -> vector<3x128xf32>
    %305 = tpu.concatenate %304, %288 in 0 : vector<3x128xf32>, vector<3x128xf32> -> vector<6x128xf32>
    %cst_33 = arith.constant 1.000000e+00 : f32
    %306 = vector.broadcast %cst_33 : f32 to vector<128x128xf32>
    %cst_34 = arith.constant dense<0.000000e+00> : vector<6x128xf32>
    %307 = tpu.matmul %305, %306, %cst_34 {dimension_numbers = #tpu.dot_dimension_numbers<[1], [0], [0], [1], [0, 0, 1, 1], [], []>} : vector<6x128xf32>, vector<128x128xf32>, vector<6x128xf32> -> vector<6x128xf32>
    %308 = vector.extract_strided_slice %307 {offsets = [0, 0], sizes = [3, 128], strides = [1, 1]} : vector<6x128xf32> to vector<3x128xf32>
    %cst_35 = arith.constant -2.000000e+02 : f32
    %cst_36 = arith.constant 2.000000e+02 : f32
    %309 = vector.broadcast %cst_35 : f32 to vector<3x128xf32>
    %310 = arith.maximumf %309, %308 : vector<3x128xf32>
    %311 = vector.broadcast %cst_36 : f32 to vector<3x128xf32>
    %312 = arith.minimumf %311, %310 : vector<3x128xf32>
    %313 = vector.extract_strided_slice %307 {offsets = [3, 0], sizes = [3, 128], strides = [1, 1]} : vector<6x128xf32> to vector<3x128xf32>
    %cst_37 = arith.constant 0.0714285746 : f32
    %314 = vector.broadcast %cst_37 : f32 to vector<3x128xf32>
    %315 = arith.mulf %313, %314 : vector<3x128xf32>
    %316 = vector.extract_strided_slice %315 {offsets = [0, 0], sizes = [2, 128], strides = [1, 1]} : vector<3x128xf32> to vector<2x128xf32>
    %317 = vector.extract_strided_slice %315 {offsets = [2, 0], sizes = [1, 128], strides = [1, 1]} : vector<3x128xf32> to vector<1x128xf32>
    %cst_38 = arith.constant 9.800000e+00 : f32
    %318 = vector.broadcast %cst_38 : f32 to vector<1x128xf32>
    %319 = arith.subf %317, %318 : vector<1x128xf32>
    %320 = tpu.concatenate %316, %319 in 0 : vector<2x128xf32>, vector<1x128xf32> -> vector<3x128xf32>
    %cst_39 = arith.constant 0.000000e+00 : f32
    %321 = vector.broadcast %cst_39 : f32 to vector<1x128xf32>
    %cst_40 = arith.constant 0.000000e+00 : f32
    %322 = vector.broadcast %cst_40 : f32 to vector<2x128xf32>
    %323 = tpu.concatenate %175, %287, %122, %321, %312, %320, %322 in 0 : vector<3x128xf32>, vector<3x128xf32>, vector<1x128xf32>, vector<1x128xf32>, vector<3x128xf32>, vector<3x128xf32>, vector<2x128xf32> -> vector<16x128xf32>
    %324 = vector.shape_cast %323 : vector<16x128xf32> to vector<1x16x128xf32>
    %c0_41 = arith.constant 0 : index
    %c0_42 = arith.constant 0 : index
    %c0_43 = arith.constant 0 : index
    %325 = vector.load %arg4[%c0_41, %c0_42, %c0_43] : memref<1x16x128xf32, #tpu.memory_space<vmem>>, vector<1x16x128xf32>
    tpu.vector_store %arg4[%c0_41, %c0_42, %c0_43], %324 {strides = array<i32>} : memref<1x16x128xf32, #tpu.memory_space<vmem>>, vector<1x16x128xf32>,
    return
  }
  func.func @transform_0(%arg0: i32, %arg1: memref<8xf32, #tpu.memory_space<smem>>) -> (i32, i32, i32) {
    %c0_i32 = arith.constant 0 : i32
    %c0_i32_0 = arith.constant 0 : i32
    %c0_i32_1 = arith.constant 0 : i32
    return %arg0, %c0_i32, %c0_i32_0 : i32, i32, i32
  }
  func.func @transform_1(%arg0: i32, %arg1: memref<8xf32, #tpu.memory_space<smem>>) -> (i32, i32, i32) {
    %c0_i32 = arith.constant 0 : i32
    %c0_i32_0 = arith.constant 0 : i32
    %c0_i32_1 = arith.constant 0 : i32
    return %arg0, %c0_i32, %c0_i32_0 : i32, i32, i32
  }
  func.func @transform_2(%arg0: i32, %arg1: memref<8xf32, #tpu.memory_space<smem>>) -> (i32, i32, i32) {
    %c0_i32 = arith.constant 0 : i32
    %c0_i32_0 = arith.constant 0 : i32
    %c0_i32_1 = arith.constant 0 : i32
    return %arg0, %c0_i32, %c0_i32_0 : i32, i32, i32
  }
}

</mosaic_0001>

<llo_original>
// kernel: dphysics_forward.1
$region0: #{dphysics_forward.1}
  #allocation0 [shape = 'u32[]', space=smem, size = 0x4, offset = 0x4, fixed_abs, tag = 'smem constant byte address 0x4 - core index']
  #allocation1 [shape = 'u32[144,128]{1,0:T(1,128)}', space=vmem, size = 0x12000, scoped, tag = 'internal scratch']
  #allocation2 [shape = 's32[1]{0}', space=sflag, size = 0x4, scoped, tag = 'scoped memory for dphysics_forward.1']
  #allocation3 [shape = 'u8[512]{0}', space=smem, size = 0x200, scoped, tag = 'prefetched SMEM operand 0']
  %s0 = inlined_call_operand.vmem [shape: f32[8], index: 0, kind: input, shape index: {}]
  %s1 = inlined_call_operand.vmem [shape: f32[2,19,128], index: 1, kind: input, shape index: {}]
  %s2 = inlined_call_operand.vmem [shape: f32[2,12,256], index: 2, kind: input, shape index: {}]
  %s3 = inlined_call_operand.vmem [shape: f32[2,16,128], index: 3, kind: output, shape index: {}]
  %s4 = sld [smem:[#allocation0]]
  $region41: #{dphysics_forward.1} parent=0
    _
  %s6 = ssub.s32 1, %s4
  %s7 = scalar_select 0, %s6, %s4
  %s8 = sshll.u32 %s0, 4
  %s9 = int_to_ptr.vmem [resolvable:$true] %s8
  %11 = dma.vmem_to_smem %s9, 16, [#allocation3], [#allocation2]
  %12 = dma.done [#allocation2], 16
  %13 = sfence
  loop: start=0, step=1, limit=4
  $region2: #{dphysics_forward.1} parent=0 // loop_pre_header
    _
  $region3: #{dphysics_forward.1} parent=0 // loop_header
    %s15 = sphi 0, %s19
    %p16 = scmp.ge.s32.totalorder %s15, 4
    %s25 = sphi 0, %s27
    %s28 = sphi 0, %s25
    %s29 = sphi 0, %s28
    %s45 = sphi 0, %s29
    %s51 = sphi 0, %s53
    %s54 = sphi 0, %s51
    %s55 = sphi 0, %s54
    %s71 = sphi 0, %s55
    %s77 = sphi 0, %s79
    %s80 = sphi 0, %s77
    %s81 = sphi 0, %s80
    %s97 = sphi 0, %s81
  $region4: #{dphysics_forward.1} parent=0 // loop_header_branch
    %18 = sbr.rel (%p16) target = $region8
  $region5: #{dphysics_forward.1} parent=0 // loop_body
    %s20 = ssub.s32 %s15, 1
    %s21 = ssub.s32 %s15, 2
    %s22 = sadd.s32 %s15, 1
    %s23 = ssub.s32 %s15, %s22
    %p24 = scmp.eq.s32.totalorder %s23, 0
    %s26 = sadd.s32 %s25, 1
    %s27 = scalar_select %p24, %s25, %s26
    %p30 = pneg %p24
    %p31 = scmp.eq.s32.totalorder %s15, 1
    %p32 = por %p30, %p31
    %p33 = scmp.ne.s32.totalorder %s25, %s28
    %p34 = scmp.eq.s32.totalorder %s15, 0
    %p35 = por %p33, %p34
    %p36 = scmp.ne.s32.totalorder %s25, %s28
    %p37 = scmp.eq.s32.totalorder %s20, 1
    %p38 = por %p36, %p37
    %p39 = scmp.ne.s32.totalorder %s28, %s29
    %p40 = scmp.eq.s32.totalorder %s20, 0
    %p41 = por %p39, %p40
    %p42 = scmp.ne.s32.totalorder %s28, %s29
    %p43 = scmp.eq.s32.totalorder %s21, 1
    %p44 = por %p42, %p43
    %p46 = scmp.ne.s32.totalorder %s29, %s45
    %p47 = scmp.eq.s32.totalorder %s21, 0
    %p48 = por %p46, %p47
    %s49 = ssub.s32 %s15, %s22
    %p50 = scmp.eq.s32.totalorder %s49, 0
    %s52 = sadd.s32 %s51, 1
    %s53 = scalar_select %p50, %s51, %s52
    %p56 = pneg %p50
    %p57 = scmp.eq.s32.totalorder %s15, 1
    %p58 = por %p56, %p57
    %p59 = scmp.ne.s32.totalorder %s51, %s54
    %p60 = scmp.eq.s32.totalorder %s15, 0
    %p61 = por %p59, %p60
    %p62 = scmp.ne.s32.totalorder %s51, %s54
    %p63 = scmp.eq.s32.totalorder %s20, 1
    %p64 = por %p62, %p63
    %p65 = scmp.ne.s32.totalorder %s54, %s55
    %p66 = scmp.eq.s32.totalorder %s20, 0
    %p67 = por %p65, %p66
    %p68 = scmp.ne.s32.totalorder %s54, %s55
    %p69 = scmp.eq.s32.totalorder %s21, 1
    %p70 = por %p68, %p69
    %p72 = scmp.ne.s32.totalorder %s55, %s71
    %p73 = scmp.eq.s32.totalorder %s21, 0
    %p74 = por %p72, %p73
    %s75 = ssub.s32 %s15, %s22
    %p76 = scmp.eq.s32.totalorder %s75, 0
    %s78 = sadd.s32 %s77, 1
    %s79 = scalar_select %p76, %s77, %s78
    %p82 = pneg %p76
    %p83 = scmp.eq.s32.totalorder %s15, 1
    %p84 = por %p82, %p83
    %p85 = scmp.ne.s32.totalorder %s77, %s80
    %p86 = scmp.eq.s32.totalorder %s15, 0
    %p87 = por %p85, %p86
    %p88 = scmp.ne.s32.totalorder %s77, %s80
    %p89 = scmp.eq.s32.totalorder %s20, 1
    %p90 = por %p88, %p89
    %p91 = scmp.ne.s32.totalorder %s80, %s81
    %p92 = scmp.eq.s32.totalorder %s20, 0
    %p93 = por %p91, %p92
    %p94 = scmp.ne.s32.totalorder %s80, %s81
    %p95 = scmp.eq.s32.totalorder %s21, 1
    %p96 = por %p94, %p95
    %p98 = scmp.ne.s32.totalorder %s81, %s97
    %p99 = scmp.eq.s32.totalorder %s21, 0
    %p100 = por %p98, %p99
    %p101 = scmp.le.s32.totalorder 1, %s15
    %p102 = scmp.lt.s32.totalorder %s15, 3
    %p103 = pnand %p101, %p102
    %p104 = pneg %p103
    // Predicated region
    $region9: #{dphysics_forward.1} parent=5 // pred_check
      _
    $region10: #{dphysics_forward.1} parent=5 // pred_check_branch
      %106 = sbr.rel (%p103) target = $region12
    $region11: #{dphysics_forward.1} parent=5 // pred_region
      %s107 = ssub.s32 %s15, 1
    $region12: #{dphysics_forward.1} parent=5 // pred_fallthru
      _
    %p108 = scmp.lt.s32.totalorder %s15, 2
    // Predicated region
    $region13: #{dphysics_forward.1} parent=5 // pred_check
      %p109 = pneg %p108
    $region14: #{dphysics_forward.1} parent=5 // pred_check_branch
      %111 = sbr.rel (%p109) target = $region16
    $region15: #{dphysics_forward.1} parent=5 // pred_region
      // Predicated region
      $region17: #{dphysics_forward.1} parent=15 // pred_check
        %p112 = pneg %p35
      $region18: #{dphysics_forward.1} parent=15 // pred_check_branch
        %114 = sbr.rel (%p112) target = $region20
      $region19: #{dphysics_forward.1} parent=15 // pred_region
        %p115 = scmp.lt.s32.totalorder %s15, 1
        %s116 = scalar_select %p115, %s15, 1
        %s117 = smul.addr %s116, 3
        %s118 = smul.addr %s117, 8
        %s119 = scalar_lea.vmem %s1, %s118
      $region20: #{dphysics_forward.1} parent=15 // pred_fallthru
        _
      // Predicated region
      $region21: #{dphysics_forward.1} parent=15 // pred_check
        %p120 = pneg %p61
      $region22: #{dphysics_forward.1} parent=15 // pred_check_branch
        %122 = sbr.rel (%p120) target = $region24
      $region23: #{dphysics_forward.1} parent=15 // pred_region
        %p123 = scmp.lt.s32.totalorder %s15, 1
        %s124 = scalar_select %p123, %s15, 1
        %s125 = smul.addr %s124, 4
        %s126 = smul.addr %s125, 8
        %s127 = scalar_lea.vmem %s2, %s126
      $region24: #{dphysics_forward.1} parent=15 // pred_fallthru
        _
    $region16: #{dphysics_forward.1} parent=5 // pred_fallthru
      _
    %p128 = scmp.le.s32.totalorder 1, %s15
    %p129 = scmp.lt.s32.totalorder %s15, 3
    %p130 = pnand %p128, %p129
    %p131 = pneg %p130
    // Predicated region
    $region25: #{dphysics_forward.1} parent=5 // pred_check
      _
    $region26: #{dphysics_forward.1} parent=5 // pred_check_branch
      %133 = sbr.rel (%p130) target = $region28
    $region27: #{dphysics_forward.1} parent=5 // pred_region
      %s134 = ssub.s32 %s15, 1
      %p135 = scmp.lt.s32.totalorder %s20, 1
      %s136 = scalar_select %p135, %s20, 1
      %s137 = smul.addr %s136, 3
      %s138 = smul.addr %s137, 8
      %s139 = scalar_lea.vmem %s1, %s138
      %p140 = pneg %p41
      %p141 = pneg %p38
      %p142 = scmp.lt.s32.totalorder %s20, 1
      %s143 = scalar_select %p142, %s20, 1
      %s144 = smul.addr %s143, 4
      %s145 = smul.addr %s144, 8
      %s146 = scalar_lea.vmem %s2, %s145
      %p147 = pneg %p67
      %p148 = pneg %p64
      %p149 = pneg %p93
      %p150 = pneg %p90
      %p151 = scmp.lt.s32.totalorder %s20, 1
      %s152 = scalar_select %p151, %s20, 1
      %s153 = smul.addr %s152, 2
      %s154 = smul.addr %s153, 8
      %s155 = scalar_lea.vmem %s3, %s154
      %p156 = scmp.lt.s32.totalorder %s20, 1
      %s157 = scalar_select %p156, %s20, 1
      %s158 = smul.addr %s157, 3
      %s159 = smul.addr %s158, 8
      %s160 = scalar_lea.vmem %s1, %s159
      %p161 = scmp.lt.s32.totalorder %s20, 1
      %s162 = scalar_select %p161, %s20, 1
      %s163 = smul.addr %s162, 4
      %s164 = smul.addr %s163, 8
      %s165 = scalar_lea.vmem %s2, %s164
      %p166 = scmp.lt.s32.totalorder %s20, 1
      %s167 = scalar_select %p166, %s20, 1
      %s168 = smul.addr %s167, 2
      %s169 = smul.addr %s168, 8
      %s170 = scalar_lea.vmem %s3, %s169
      %s171 = sld [smem:[#allocation3]]
      %s172 = sld [smem:[#allocation3 + $0x1]]
      %s173 = sld [smem:[#allocation3 + $0x2]]
      %s174 = sld [smem:[#allocation3 + $0x3]]
      %s175 = sld [smem:[#allocation3 + $0x4]]
      %s176 = sld [smem:[#allocation3 + $0x5]]
      %v177 = vld [vmem:[%s160] sm:$0xff]
      %v178 = vld [vmem:[%s160 + $0x8] sm:$0xff]
      %v179 = vld [vmem:[%s160 + $0x10] sm:$0x7]
      %v180 = vstv %s174
      %v181 = vadd.f32 %v177, %v180
      %v182 = vstv %s175
      %v183 = vmul.f32 %v181, %v182
      %v184 = vmax.f32 %v183, 0.0
      %v185 = vmin.f32 %v184, 15.0
      %v186 = vstv %s176
      %v187 = vmul.f32 %v181, %v186
      %v188 = vmax.f32 %v187, 0.0
      %v189 = vmin.f32 %v188, 15.0
      %v190 = vfloor.f32 %v185
      %v191 = vcvt.f32.s32.to.zero.pseudo %v190
      %vm192 = vcmp.gt.s32.totalorder %v191, 0
      %v193 = vsel %vm192, %v191, 0
      %vm194 = vcmp.lt.s32.totalorder %v193, 14
      %v195 = vsel %vm194, %v193, 14
      %v196 = vfloor.f32 %v189
      %v197 = vcvt.f32.s32.to.zero.pseudo %v196
      %vm198 = vcmp.gt.s32.totalorder %v197, 0
      %v199 = vsel %vm198, %v197, 0
      %vm200 = vcmp.lt.s32.totalorder %v199, 14
      %v201 = vsel %vm200, %v199, 14
      %v202 = vcvt.s32.f32 %v195
      %v203 = vsub.f32 %v185, %v202
      %v204 = vcvt.s32.f32 %v201
      %v205 = vsub.f32 %v189, %v204
      %v206 = vmul.u32 %v201, 16
      %v207 = vrot.slane %v195, 7
      %v208 = vadd.s32 %v206, %v207
      %v209 = vlaneseq
      %v210 = vshrl.u32 %v209, 7
      %v211 = vadd.s32 %v210, 8
      %v212 = vadd.s32 %v210, 16
      %v213 = vadd.s32 %v210, 24
      %v214 = vadd.s32 %v210, 32
      %v215 = vadd.s32 %v210, 40
      %v216 = vadd.s32 %v210, 48
      %v217 = vadd.s32 %v210, 56
      %v218 = vadd.s32 %v210, 64
      %v219 = vadd.s32 %v210, 72
      %v220 = vadd.s32 %v210, 80
      %v221 = vadd.s32 %v210, 88
      %v222 = vadd.s32 %v210, 96
      %v223 = vadd.s32 %v210, 104
      %v224 = vadd.s32 %v210, 112
      %v225 = vadd.s32 %v210, 120
      %v226 = vadd.s32 %v210, 128
      %v227 = vadd.s32 %v210, 136
      %v228 = vadd.s32 %v210, 144
      %v229 = vadd.s32 %v210, 152
      %v230 = vadd.s32 %v210, 160
      %v231 = vadd.s32 %v210, 168
      %v232 = vadd.s32 %v210, 176
      %v233 = vadd.s32 %v210, 184
      %v234 = vadd.s32 %v210, 192
      %v235 = vadd.s32 %v210, 200
      %v236 = vadd.s32 %v210, 208
      %v237 = vadd.s32 %v210, 216
      %v238 = vadd.s32 %v210, 224
      %v239 = vadd.s32 %v210, 232
      %v240 = vadd.s32 %v210, 240
      %v241 = vadd.s32 %v210, 248
      %v242 = vlaneseq
      %v243 = vshrl.u32 %v242, 7
      %v244 = vsub.s32 1, %v243
      %v245 = vrot.slane %v208, %v244
      %vm246 = vcmp.eq.s32.totalorder %v210, %v245
      %vm247 = vcmp.eq.s32.totalorder %v211, %v245
      %vm248 = vcmp.eq.s32.totalorder %v212, %v245
      %vm249 = vcmp.eq.s32.totalorder %v213, %v245
      %vm250 = vcmp.eq.s32.totalorder %v214, %v245
      %vm251 = vcmp.eq.s32.totalorder %v215, %v245
      %vm252 = vcmp.eq.s32.totalorder %v216, %v245
      %vm253 = vcmp.eq.s32.totalorder %v217, %v245
      %vm254 = vcmp.eq.s32.totalorder %v218, %v245
      %vm255 = vcmp.eq.s32.totalorder %v219, %v245
      %vm256 = vcmp.eq.s32.totalorder %v220, %v245
      %vm257 = vcmp.eq.s32.totalorder %v221, %v245
      %vm258 = vcmp.eq.s32.totalorder %v222, %v245
      %vm259 = vcmp.eq.s32.totalorder %v223, %v245
      %vm260 = vcmp.eq.s32.totalorder %v224, %v245
      %vm261 = vcmp.eq.s32.totalorder %v225, %v245
      %vm262 = vcmp.eq.s32.totalorder %v226, %v245
      %vm263 = vcmp.eq.s32.totalorder %v227, %v245
      %vm264 = vcmp.eq.s32.totalorder %v228, %v245
      %vm265 = vcmp.eq.s32.totalorder %v229, %v245
      %vm266 = vcmp.eq.s32.totalorder %v230, %v245
      %vm267 = vcmp.eq.s32.totalorder %v231, %v245
      %vm268 = vcmp.eq.s32.totalorder %v232, %v245
      %vm269 = vcmp.eq.s32.totalorder %v233, %v245
      %vm270 = vcmp.eq.s32.totalorder %v234, %v245
      %vm271 = vcmp.eq.s32.totalorder %v235, %v245
      %vm272 = vcmp.eq.s32.totalorder %v236, %v245
      %vm273 = vcmp.eq.s32.totalorder %v237, %v245
      %vm274 = vcmp.eq.s32.totalorder %v238, %v245
      %vm275 = vcmp.eq.s32.totalorder %v239, %v245
      %vm276 = vcmp.eq.s32.totalorder %v240, %v245
      %vm277 = vcmp.eq.s32.totalorder %v241, %v245
      %v278 = vsel %vm246, 1.0, 0.0
      %v279 = vsel %vm247, 1.0, 0.0
      %v280 = vsel %vm248, 1.0, 0.0
      %v281 = vsel %vm249, 1.0, 0.0
      %v282 = vsel %vm250, 1.0, 0.0
      %v283 = vsel %vm251, 1.0, 0.0
      %v284 = vsel %vm252, 1.0, 0.0
      %v285 = vsel %vm253, 1.0, 0.0
      %v286 = vsel %vm254, 1.0, 0.0
      %v287 = vsel %vm255, 1.0, 0.0
      %v288 = vsel %vm256, 1.0, 0.0
      %v289 = vsel %vm257, 1.0, 0.0
      %v290 = vsel %vm258, 1.0, 0.0
      %v291 = vsel %vm259, 1.0, 0.0
      %v292 = vsel %vm260, 1.0, 0.0
      %v293 = vsel %vm261, 1.0, 0.0
      %v294 = vsel %vm262, 1.0, 0.0
      %v295 = vsel %vm263, 1.0, 0.0
      %v296 = vsel %vm264, 1.0, 0.0
      %v297 = vsel %vm265, 1.0, 0.0
      %v298 = vsel %vm266, 1.0, 0.0
      %v299 = vsel %vm267, 1.0, 0.0
      %v300 = vsel %vm268, 1.0, 0.0
      %v301 = vsel %vm269, 1.0, 0.0
      %v302 = vsel %vm270, 1.0, 0.0
      %v303 = vsel %vm271, 1.0, 0.0
      %v304 = vsel %vm272, 1.0, 0.0
      %v305 = vsel %vm273, 1.0, 0.0
      %v306 = vsel %vm274, 1.0, 0.0
      %v307 = vsel %vm275, 1.0, 0.0
      %v308 = vsel %vm276, 1.0, 0.0
      %v309 = vsel %vm277, 1.0, 0.0
      %v310 = vld [vmem:[%s165] sm:$0xff]
      %v311 = vld [vmem:[%s165 + $0x8] sm:$0xff]
      %v312 = vld [vmem:[%s165 + $0x10] sm:$0xf]
      %v313 = vld [vmem:[%s165 + $0x18] sm:$0xf]
      %314 = vmatprep.subr.mxu0 0.0
      %315 = vmatpush1.msra.mxu0 %v293
      %316 = vmatprep.subr.mxu0 0.0
      %317 = vmatpush1.msra.mxu0 %v292
      %318 = vmatprep.subr.mxu0 0.0
      %319 = vmatpush1.msra.mxu0 %v291
      %320 = vmatprep.subr.mxu0 0.0
      %321 = vmatpush1.msra.mxu0 %v290
      %322 = vmatprep.subr.mxu0 0.0
      %323 = vmatpush1.msra.mxu0 %v289
      %324 = vmatprep.subr.mxu0 0.0
      %325 = vmatpush1.msra.mxu0 %v288
      %326 = vmatprep.subr.mxu0 0.0
      %327 = vmatpush1.msra.mxu0 %v287
      %328 = vmatprep.subr.mxu0 0.0
      %329 = vmatpush1.msra.mxu0 %v286
      %330 = vmatprep.subr.mxu0 0.0
      %331 = vmatpush1.msra.mxu0 %v285
      %332 = vmatprep.subr.mxu0 0.0
      %333 = vmatpush1.msra.mxu0 %v284
      %334 = vmatprep.subr.mxu0 0.0
      %335 = vmatpush1.msra.mxu0 %v283
      %336 = vmatprep.subr.mxu0 0.0
      %337 = vmatpush1.msra.mxu0 %v282
      %338 = vmatprep.subr.mxu0 0.0
      %339 = vmatpush1.msra.mxu0 %v281
      %340 = vmatprep.subr.mxu0 0.0
      %341 = vmatpush1.msra.mxu0 %v280
      %342 = vmatprep.subr.mxu0 0.0
      %343 = vmatpush1.msra.mxu0 %v279
      %344 = vmatprep.subr.mxu0 0.0
      %345 = vmatpush1.msra.mxu0 %v278
      %346 = vmatprep.subr.mxu0 0.0
      %347 = vmatpush2.msra.mxu0 %v309
      %348 = vmatprep.subr.mxu0 0.0
      %349 = vmatpush2.msra.mxu0 %v308
      %350 = vmatprep.subr.mxu0 0.0
      %351 = vmatpush2.msra.mxu0 %v307
      %352 = vmatprep.subr.mxu0 0.0
      %353 = vmatpush2.msra.mxu0 %v306
      %354 = vmatprep.subr.mxu0 0.0
      %355 = vmatpush2.msra.mxu0 %v305
      %356 = vmatprep.subr.mxu0 0.0
      %357 = vmatpush2.msra.mxu0 %v304
      %358 = vmatprep.subr.mxu0 0.0
      %359 = vmatpush2.msra.mxu0 %v303
      %360 = vmatprep.subr.mxu0 0.0
      %361 = vmatpush2.msra.mxu0 %v302
      %362 = vmatprep.subr.mxu0 0.0
      %363 = vmatpush2.msra.mxu0 %v301
      %364 = vmatprep.subr.mxu0 0.0
      %365 = vmatpush2.msra.mxu0 %v300
      %366 = vmatprep.subr.mxu0 0.0
      %367 = vmatpush2.msra.mxu0 %v299
      %368 = vmatprep.subr.mxu0 0.0
      %369 = vmatpush2.msra.mxu0 %v298
      %370 = vmatprep.subr.mxu0 0.0
      %371 = vmatpush2.msra.mxu0 %v297
      %372 = vmatprep.subr.mxu0 0.0
      %373 = vmatpush2.msra.mxu0 %v296
      %374 = vmatprep.subr.mxu0 0.0
      %375 = vmatpush2.msra.mxu0 %v295
      %376 = vmatprep.subr.mxu0 0.0
      %377 = vmatpush2.msra.mxu0 %v294
      %378 = vmatprep.mubr.f32.mxu0 %v311
      %379 = vmatmul.mubr.f32.gmra.mxu0 %v310
      %v380 = vpop.f32.mrf.mxu0
      %v381 = vadd.f32 0.0, %v380
      %v382 = vpop.f32.mrf.mxu0
      %383 = vmatprep.mubr.f32.mxu0 %v313
      %384 = vmatmul.mubr.f32.gmra.mxu0 %v312
      %v385 = vpop.f32.mrf.mxu0
      %v386 = vadd.f32 0.0, %v385
      %v387 = vpop.f32.mrf.mxu0
      %388 = vdwg.mxu0
      %v389 = vsub.f32 1.0, %v203
      %v390 = vsub.f32 1.0, %v205
      %v392 = vrot.slane %v390, 1
      %v394 = vmul.f32 %v389, %v392
      %v395 = vmul.f32 %v203, %v392
      %v397 = vrot.slane %v205, 1
      %v399 = vmul.f32 %v389, %v397
      %v400 = vmul.f32 %v203, %v397
      %v401 = vlaneseq
      %v402 = vshrl.u32 %v401, 7
      %v403 = vsub.s32 0, %v402
      %v404 = vrot.slane %v394, %v403
      %v405 = vmul.f32 %v404, %v381
      %v406 = vlaneseq
      %v407 = vshrl.u32 %v406, 7
      %v408 = vsub.s32 0, %v407
      %v409 = vrot.slane %v395, %v408
      %v410 = vmul.f32 %v409, %v381
      %v412 = vrot.slane %v410, 3
      %v414 = vadd.f32 %v405, %v412
      %v415 = vlaneseq
      %v416 = vshrl.u32 %v415, 7
      %v417 = vsub.s32 0, %v416
      %v418 = vrot.slane %v399, %v417
      %v419 = vmul.f32 %v418, %v381
      %v420 = vmul.f32 %v418, %v386
      %vm423 = vcmask 1041408
      %v424 = vrot.slane %v419, 6
      %v425 = vrot.slane %v420, 6
      %v426 = vsel %vm423, %v424, %v425
      %v428 = vadd.f32 %v414, %v426
      %v429 = vlaneseq
      %v430 = vshrl.u32 %v429, 7
      %v431 = vsub.s32 0, %v430
      %v432 = vrot.slane %v400, %v431
      %v433 = vmul.f32 %v432, %v386
      %v435 = vrot.slane %v433, 1
      %v437 = vadd.f32 %v428, %v435
      %v438 = vmul.f32 %v437, %v437
      %v440 = vrot.slane %v438, 1
      %v442 = vadd.f32 %v438, %v440
      %v443 = vadd.f32 %v442, 1.0
      %v444 = vrsqrt.pop %v443
      %v445 = vsub.f32 0.0, %v437
      %v447 = vrot.slane %v445, 1
      %vm449 = vcmask 1040384
      %v450 = vsel %vm423, %v447, 1.0
      %v451 = vlaneseq
      %v452 = vshrl.u32 %v451, 7
      %v453 = vsub.s32 1, %v452
      %v454 = vrot.slane %v444, %v453
      %v455 = vmul.f32 %v450, %v454
      %v457 = vrot.slane %v437, 6
      %v459 = vsub.f32 %v177, %v457
      %v460 = vmul.f32 %v459, %v455
      %v461 = vmul.f32 %v460, 20.0
      %v462 = vand.u32 2147483647, %v461
      %v463 = vsub.f32 0.0, %v462
      %v464 = vmul.f32 %v463, 1.442695
      %v465 = vpow.pop %v464
      %v466 = vadd.f32 %v465, 1.0
      %v467 = vrcp.pop %v466
      %vm468 = vcmp.ge.f32.partialorder %v461, 0.0
      %v469 = vmul.f32 %v465, %v467
      %v470 = vsel %vm468, %v469, %v467
      %v471 = vmul.f32 %v470, %v179
      %v472 = vmul.f32 %v460, %v471
      %v474 = vrot.slane %v178, 4
      %v476 = vsub.f32 %v177, %v474
      %v477 = vmul.f32 %v178, %v476
      %v479 = vrot.slane %v476, 6
      %v481 = vmul.f32 %v178, %v479
      %v483 = vrot.slane %v481, 1
      %v485 = vsub.f32 %v477, %v483
      %v486 = vrot.slane %v476, 5
      %v488 = vmul.f32 %v178, %v486
      %v489 = vrot.slane %v476, 1
      %v491 = vmul.f32 %v178, %v489
      %v493 = vrot.slane %v491, 6
      %v495 = vsub.f32 %v488, %v493
      %v497 = vrot.slane %v485, 2
      %v500 = vrot.slane %v495, 2
      %v502 = vrot.slane %v485, 7
      %v504 = vsel %vm449, %v497, %v500
      %v505 = vsel %vm423, %v504, %v502
      %v507 = vrot.slane %v505, 2
      %v509 = vadd.f32 %v177, %v507
      %v510 = vadd.f32 %v178, %v507
      %vm511 = vcmask 1042434
      %v512 = vsel %vm511, %v471, 0.0
      %513 = vadd.xlane.f32.xlu0 %v512
      %v514 = vpop.xlane.xlu0 %513
      %v515 = vmax.f32 %v514, 1.0
      %v516 = vrcp.pop %v515
      %v518 = vrot.slane %v455, 2
      %v520 = vmul.f32 %v509, %v518
      %v522 = vrot.slane %v520, 1
      %v524 = vadd.f32 %v520, %v522
      %v525 = vmul.f32 %v510, %v518
      %v527 = vrot.slane %v525, 2
      %v529 = vadd.f32 %v524, %v527
      %s530 = smul.f32 %s171, 14.0
      %v531 = vstv %s530
      %v532 = vmul.f32 %v531, %v516
      %v533 = vrsqrt.pop %v532
      %v534 = vmul.f32 %v532, %v533
      %vm535 = vcmp.eq.f32.partialorder %v532, inf
      %v536 = vsel %vm535, %v532, %v534
      %vm537 = vcmp.eq.f32.partialorder %v532, 0.0
      %v538 = vand.u32 %v532, 2147483648
      %v539 = vsel %vm537, %v538, %v536
      %v540 = vmul.f32 %v539, 2.0
      %v541 = vstv %s171
      %v542 = vmul.f32 %v541, %v472
      %v544 = vrot.slane %v529, 4
      %v546 = vmul.f32 %v540, %v544
      %v547 = vadd.f32 %v542, %v546
      %v548 = vsub.f32 0.0, %v547
      %v549 = vmul.f32 %v548, %v471
      %v550 = vmul.f32 %v549, %v516
      %v551 = vlaneseq
      %v552 = vshrl.u32 %v551, 7
      %v553 = vsub.s32 2, %v552
      %v554 = vrot.slane %v550, %v553
      %v555 = vmul.f32 %v554, %v455
      %v556 = vand.u32 2147483647, %v550
      %v557 = vrot.slane %v455, 1
      %v559 = vmul.f32 %v178, %v557
      %v560 = vmul.f32 %v179, %v557
      %v562 = vrot.slane %v560, 1
      %v564 = vadd.f32 %v559, %v562
      %v565 = vrot.slane %v560, 2
      %v567 = vadd.f32 %v564, %v565
      %v568 = vlaneseq
      %v569 = vshrl.u32 %v568, 7
      %v570 = vsub.s32 7, %v569
      %v571 = vrot.slane %v567, %v570
      %v572 = vmul.f32 %v571, %v455
      %v574 = vrot.slane %v572, 1
      %v576 = vsub.f32 %v178, %v574
      %v577 = vsub.f32 %v179, %v574
      %v578 = vmul.f32 %v576, %v576
      %v579 = vmul.f32 %v577, %v577
      %v581 = vrot.slane %v579, 1
      %v583 = vadd.f32 %v578, %v581
      %v584 = vrot.slane %v579, 2
      %v586 = vadd.f32 %v583, %v584
      %v587 = vmax.f32 %v586, 1e-18
      %v588 = vrsqrt.pop %v587
      %v589 = vlaneseq
      %v590 = vshrl.u32 %v589, 7
      %v591 = vsub.s32 7, %v590
      %v592 = vrot.slane %v588, %v591
      %v593 = vmul.f32 %v576, %v592
      %v594 = vmul.f32 %v577, %v592
      %v595 = vmul.f32 %v594, %v518
      %v596 = vmul.f32 %v594, %v455
      %v598 = vrot.slane %v596, 1
      %v600 = vsub.f32 %v595, %v598
      %v601 = vrot.slane %v455, 7
      %v603 = vmul.f32 %v594, %v601
      %v604 = vrot.slane %v455, 3
      %v606 = vmul.f32 %v593, %v604
      %v608 = vrot.slane %v606, 6
      %v610 = vsub.f32 %v603, %v608
      %v611 = vmul.f32 %v593, %v518
      %v612 = vsub.f32 %v611, %v598
      %v614 = vrot.slane %v612, 5
      %v616 = vsel %vm449, %v600, %v610
      %v617 = vsel %vm423, %v616, %v614
      %v618 = vmul.f32 %v617, %v617
      %v620 = vrot.slane %v618, 1
      %v622 = vadd.f32 %v618, %v620
      %v623 = vrot.slane %v618, 2
      %v625 = vadd.f32 %v622, %v623
      %v626 = vmax.f32 %v625, 1e-18
      %v627 = vrsqrt.pop %v626
      %v628 = vlaneseq
      %v629 = vshrl.u32 %v628, 7
      %v630 = vsub.s32 0, %v629
      %v631 = vrot.slane %v627, %v630
      %v632 = vmul.f32 %v617, %v631
      %vm635 = vcmask 1044480
      %v636 = vrot.slane %v509, 3
      %v637 = vrot.slane %v510, 3
      %v638 = vsel %vm635, %v636, %v637
      %v640 = vsub.f32 %v177, %v638
      %v641 = vrot.slane %v455, 5
      %v643 = vmul.f32 %v640, %v641
      %v645 = vrot.slane %v643, 1
      %v647 = vadd.f32 %v643, %v645
      %v648 = vrot.slane %v643, 2
      %v650 = vadd.f32 %v647, %v648
      %v651 = vlaneseq
      %v652 = vshrl.u32 %v651, 7
      %v653 = vsub.s32 3, %v652
      %v654 = vrot.slane %v650, %v653
      %v655 = vmul.f32 %v654, %v455
      %v657 = vrot.slane %v655, 5
      %v659 = vsub.f32 %v640, %v657
      %v660 = vtanh.pop %v659
      %v662 = vrot.slane %v593, 4
      %v664 = vmul.f32 %v660, %v662
      %v666 = vrot.slane %v594, 4
      %v668 = vmul.f32 %v660, %v666
      %v670 = vrot.slane %v668, 1
      %v672 = vadd.f32 %v664, %v670
      %v673 = vrot.slane %v668, 2
      %v675 = vadd.f32 %v672, %v673
      %v676 = vlaneseq
      %v677 = vshrl.u32 %v676, 7
      %v678 = vsub.s32 3, %v677
      %v679 = vrot.slane %v675, %v678
      %v680 = vmul.f32 %v679, %v593
      %v681 = vmul.f32 %v679, %v594
      %v683 = vrot.slane %v632, 5
      %v685 = vmul.f32 %v660, %v683
      %v687 = vrot.slane %v685, 1
      %v689 = vadd.f32 %v685, %v687
      %v690 = vrot.slane %v685, 2
      %v692 = vadd.f32 %v689, %v690
      %v693 = vlaneseq
      %v694 = vshrl.u32 %v693, 7
      %v695 = vsub.s32 3, %v694
      %v696 = vrot.slane %v692, %v695
      %v697 = vmul.f32 %v696, %v632
      %v698 = vstv %s172
      %v699 = vmul.f32 %v698, %v680
      %v700 = vmul.f32 %v698, %v681
      %v701 = vstv %s173
      %v702 = vmul.f32 %v701, %v697
      %v704 = vrot.slane %v702, 1
      %v706 = vadd.f32 %v699, %v704
      %v707 = vadd.f32 %v700, %v704
      %v708 = vlaneseq
      %v709 = vshrl.u32 %v708, 7
      %v710 = vsub.s32 2, %v709
      %v711 = vrot.slane %v556, %v710
      %v712 = vmul.f32 %v706, %v711
      %v713 = vmul.f32 %v707, %v711
      %v716 = vrot.slane %v712, 7
      %v717 = vrot.slane %v713, 7
      %v718 = vsel %vm449, %v716, %v717
      %v720 = vadd.f32 %v555, %v718
      %v722 = vrot.slane %v720, 1
      %v724 = vmul.f32 %v476, %v722
      %v725 = vrot.slane %v720, 7
      %v727 = vmul.f32 %v476, %v725
      %v729 = vrot.slane %v727, 1
      %v731 = vsub.f32 %v724, %v729
      %v732 = vrot.slane %v720, 6
      %v734 = vmul.f32 %v476, %v732
      %v735 = vrot.slane %v720, 2
      %v737 = vmul.f32 %v476, %v735
      %v739 = vrot.slane %v737, 6
      %v741 = vsub.f32 %v734, %v739
      %v743 = vrot.slane %v731, 1
      %v746 = vrot.slane %v741, 1
      %v748 = vrot.slane %v731, 6
      %v750 = vsel %vm449, %v743, %v746
      %v751 = vsel %vm423, %v750, %v748
      %v752 = vrot.slane %v720, 5
      %vm754 = vcmask 1042432
      %v755 = vsel %vm754, %v751, %v752
      %756 = vmatprep.subr.mxu0 0.0
      %757 = vmatpush1.msra.mxu0 1.0
      %758 = vmatprep.subr.mxu0 0.0
      %759 = vmatpush1.msra.mxu0 1.0
      %760 = vmatprep.subr.mxu0 0.0
      %761 = vmatpush1.msra.mxu0 1.0
      %762 = vmatprep.subr.mxu0 0.0
      %763 = vmatpush1.msra.mxu0 1.0
      %764 = vmatprep.subr.mxu0 0.0
      %765 = vmatpush1.msra.mxu0 1.0
      %766 = vmatprep.subr.mxu0 0.0
      %767 = vmatpush1.msra.mxu0 1.0
      %768 = vmatprep.subr.mxu0 0.0
      %769 = vmatpush1.msra.mxu0 1.0
      %770 = vmatprep.subr.mxu0 0.0
      %771 = vmatpush1.msra.mxu0 1.0
      %772 = vmatprep.subr.mxu0 0.0
      %773 = vmatpush1.msra.mxu0 1.0
      %774 = vmatprep.subr.mxu0 0.0
      %775 = vmatpush1.msra.mxu0 1.0
      %776 = vmatprep.subr.mxu0 0.0
      %777 = vmatpush1.msra.mxu0 1.0
      %778 = vmatprep.subr.mxu0 0.0
      %779 = vmatpush1.msra.mxu0 1.0
      %780 = vmatprep.subr.mxu0 0.0
      %781 = vmatpush1.msra.mxu0 1.0
      %782 = vmatprep.subr.mxu0 0.0
      %783 = vmatpush1.msra.mxu0 1.0
      %784 = vmatprep.subr.mxu0 0.0
      %785 = vmatpush1.msra.mxu0 1.0
      %786 = vmatprep.subr.mxu0 0.0
      %787 = vmatpush1.msra.mxu0 1.0
      %788 = vmatprep.subr.mxu0 0.0
      %789 = vmatpush2.msra.mxu0 0.0
      %790 = vmatprep.subr.mxu0 0.0
      %791 = vmatpush2.msra.mxu0 0.0
      %792 = vmatprep.subr.mxu0 0.0
      %793 = vmatpush2.msra.mxu0 0.0
      %794 = vmatprep.subr.mxu0 0.0
      %795 = vmatpush2.msra.mxu0 0.0
      %796 = vmatprep.subr.mxu0 0.0
      %797 = vmatpush2.msra.mxu0 0.0
      %798 = vmatprep.subr.mxu0 0.0
      %799 = vmatpush2.msra.mxu0 0.0
      %800 = vmatprep.subr.mxu0 0.0
      %801 = vmatpush2.msra.mxu0 0.0
      %802 = vmatprep.subr.mxu0 0.0
      %803 = vmatpush2.msra.mxu0 0.0
      %804 = vmatprep.subr.mxu0 0.0
      %805 = vmatpush2.msra.mxu0 0.0
      %806 = vmatprep.subr.mxu0 0.0
      %807 = vmatpush2.msra.mxu0 0.0
      %808 = vmatprep.subr.mxu0 0.0
      %809 = vmatpush2.msra.mxu0 0.0
      %810 = vmatprep.subr.mxu0 0.0
      %811 = vmatpush2.msra.mxu0 0.0
      %812 = vmatprep.subr.mxu0 0.0
      %813 = vmatpush2.msra.mxu0 0.0
      %814 = vmatprep.subr.mxu0 0.0
      %815 = vmatpush2.msra.mxu0 0.0
      %816 = vmatprep.subr.mxu0 0.0
      %817 = vmatpush2.msra.mxu0 0.0
      %818 = vmatprep.subr.mxu0 0.0
      %819 = vmatpush2.msra.mxu0 0.0
      %820 = vmatprep.mubr.f32.mxu0 0.0
      %821 = vmatmul.mubr.f32.gmra.mxu0 %v755
      %v822 = vpop.f32.mrf.mxu0
      %v823 = vadd.f32 0.0, %v822
      %v824 = vpop.f32.mrf.mxu0
      %825 = vdwg.mxu0
      %v826 = vmax.f32 %v823, -200.0
      %v827 = vmin.f32 %v826, 200.0
      %v828 = vmul.f32 %v823, 0.071428575
      %v829 = vsub.f32 %v828, 9.8
      %v831 = vrot.slane %v828, 3
      %v834 = vrot.slane %v829, 3
      %v836 = vsel %vm423, %v831, %v834
      %vm837 = vcmask 1043456
      %v838 = vrot.slane %v712, 4
      %v839 = vrot.slane %v713, 4
      %v840 = vsel %vm837, %v838, %v839
      %v843 = vrot.slane %v471, 4
      %v846 = vrot.slane %v836, 5
      %v848 = vsel %vm754, %v555, %v840
      %vm849 = vcmask 1045504
      %v850 = vsel %vm849, %v848, %v843
      %vm851 = vcmask 1046528
      %v852 = vsel %vm851, %v850, 0.0
      %v853 = vsel %vm754, %v827, %v846
      %v854 = vsel %vm849, %v853, 0.0
      %855 = vst [vmem:[%s170] sm:$0xff] %v852
      %856 = vst [vmem:[%s170 + $0x8] sm:$0xff] %v854
      %p857 = scmp.lt.s32.totalorder %s20, 1
      %s858 = scalar_select %p857, %s20, 1
      %s859 = smul.addr %s858, 2
      %s860 = smul.addr %s859, 8
      %s861 = scalar_lea.vmem %s3, %s860
      // Predicated region
      $region29: #{dphysics_forward.1} parent=27 // pred_check
        %p862 = pneg %p90
      $region30: #{dphysics_forward.1} parent=27 // pred_check_branch
        %864 = sbr.rel (%p862) target = $region32
      $region31: #{dphysics_forward.1} parent=27 // pred_region
        _
      $region32: #{dphysics_forward.1} parent=27 // pred_fallthru
        _
    $region28: #{dphysics_forward.1} parent=5 // pred_fallthru
      _
    %p865 = scmp.le.s32.totalorder 2, %s15
    // Predicated region
    $region33: #{dphysics_forward.1} parent=5 // pred_check
      %p866 = pneg %p865
    $region34: #{dphysics_forward.1} parent=5 // pred_check_branch
      %868 = sbr.rel (%p866) target = $region36
    $region35: #{dphysics_forward.1} parent=5 // pred_region
      %s869 = ssub.s32 %s15, 2
      // Predicated region
      $region37: #{dphysics_forward.1} parent=35 // pred_check
        %p870 = pneg %p96
      $region38: #{dphysics_forward.1} parent=35 // pred_check_branch
        %872 = sbr.rel (%p870) target = $region40
      $region39: #{dphysics_forward.1} parent=35 // pred_region
        %p873 = scmp.lt.s32.totalorder %s21, 1
        %s874 = scalar_select %p873, %s21, 1
        %s875 = smul.addr %s874, 2
        %s876 = smul.addr %s875, 8
        %s877 = scalar_lea.vmem %s3, %s876
      $region40: #{dphysics_forward.1} parent=35 // pred_fallthru
        _
    $region36: #{dphysics_forward.1} parent=5 // pred_fallthru
      _
  $region6: #{dphysics_forward.1} parent=0 // loop_footer
    %s19 = sadd.s32 1, %s15
  $region7: #{dphysics_forward.1} parent=0 // loop_footer_branch
    %14 = sbr.rel target = $region3
  $region8: #{dphysics_forward.1} parent=0 // loop_exit
    _

</llo_original>
